<compile_context>
chip_gen: v7x
topology: tpu7x:2x2x1
jax: 0.10.0
libtpu: 0.0.40
codegen_flags: <defaults>
</compile_context>

<pallas_src>
import functools

import jax
import jax.numpy as jnp
import numpy as np
from jax import lax
from jax.experimental import pallas as pl
from jax.experimental.pallas import tpu as pltpu

EPS = 1e-5
_VMEM_LIMIT = 32 * 1024 * 1024   # safe scoped-VMEM budget on v5e/v6e/v7x


def _pick_tile_m(m):
    """Largest tile (<=512, multiple of 8) that divides M; else one full block."""
    for t in (512, 256, 128, 64, 32, 16, 8):
        if t <= m and m % t == 0:
            return t
    return m   # block dim == full array dim is always legal


# ------------- pass 1: conv-transpose matmuls + fused BN statistics -------------

def _convt_stats_kernel(p_ref, w_ref, gamma_ref, beta_ref,
                        y_ref, scale_ref, shift_ref,
                        acc_sum, acc_ssq, *, inv_count):
    g = pl.program_id(0)          # output-parity branch (ho%2, wo%2)
    m = pl.program_id(1)          # M tile

    @pl.when(jnp.logical_and(g == 0, m == 0))
    def _():
        acc_sum[...] = jnp.zeros_like(acc_sum)
        acc_ssq[...] = jnp.zeros_like(acc_ssq)

    # (tile_m, 4*Cin) bf16 @ (4*Cin, Cpad) bf16 -> f32 on the MXU
    y = jnp.dot(p_ref[...], w_ref[...], preferred_element_type=jnp.float32)
    y_ref[...] = y

    # single-pass global BN statistics (per-channel sum / sum-of-squares)
    acc_sum[...] += jnp.sum(y, axis=0, keepdims=True)
    acc_ssq[...] += jnp.sum(y * y, axis=0, keepdims=True)

    @pl.when(jnp.logical_and(g == pl.num_programs(0) - 1,
                             m == pl.num_programs(1) - 1))
    def _():
        mean = acc_sum[...] * inv_count
        var = jnp.maximum(acc_ssq[...] * inv_count - mean * mean, 0.0)  # biased
        inv = lax.rsqrt(var + EPS)
        scale = gamma_ref[...] * inv
        scale_ref[...] = scale
        shift_ref[...] = beta_ref[...] - mean * scale


# ---------------------- pass 2: BN apply (FMA) + ReLU ---------------------------

def _bn_relu_kernel(y_ref, scale_ref, shift_ref, o_ref):
    o_ref[...] = jnp.maximum(y_ref[...] * scale_ref[...] + shift_ref[...], 0.0)


def generator_block(x_nchw, w_t, gamma, beta, *, stride=2, padding=1):
    """x_nchw: (N, Cin, H, W) f32; w_t: (Cin, Cout, 4, 4) PyTorch ConvTranspose2d weight."""
    N, Cin, H, W = x_nchw.shape
    _, Cout, kH, kW = w_t.shape
    assert (kH, kW, stride, padding) == (4, 4, 2, 1), \
        "sub-pixel decomposition specialised to kernel=4, stride=2, padding=1"
    Ho, Wo = 2 * H, 2 * W
    M = N * H * W                          # rows per parity branch
    K = 4 * Cin                            # 2x2 taps * Cin (dense, no zeros)
    Cpad = ((Cout + 127) // 128) * 128     # lane-dense output channels

    # ---- glue (pure data movement): NCHW -> NHWC, pad spatial by 1 ----
    x = jnp.transpose(x_nchw, (0, 2, 3, 1))
    xp = jnp.pad(x, ((0, 0), (1, 1), (1, 1), (0, 0)))

    # ---- sub-pixel decomposition ----
    # y[n, co, 2a+ph, 2b+pw] =
    #   sum_{r,s,ci} xp[n, a+ph+r, b+pw+s, ci] * w_t[ci, co, 3-ph-2r, 3-pw-2s]
    p_list, w_list = [], []
    for ph in (0, 1):
        for pw in (0, 1):
            taps, wrows = [], []
            for r in (0, 1):
                for s in (0, 1):
                    taps.append(xp[:, ph + r:ph + r + H, pw + s:pw + s + W, :])
                    wrows.append(w_t[:, :, 3 - ph - 2 * r, 3 - pw - 2 * s])  # (Cin, Cout)
            p_list.append(jnp.stack(taps, axis=3).reshape(M, K))             # (M, 4*Cin)
            w_list.append(jnp.concatenate(wrows, axis=0))                    # (4*Cin, Cout)
    patches = jnp.stack(p_list, axis=0).astype(jnp.bfloat16)                 # (4, M, K)
    wmats = jnp.stack(w_list, axis=0)                                        # (4, K, Cout)
    wmats = jnp.pad(wmats, ((0, 0), (0, 0), (0, Cpad - Cout))).astype(jnp.bfloat16)
    gamma_p = jnp.pad(gamma.reshape(1, Cout).astype(jnp.float32),
                      ((0, 0), (0, Cpad - Cout)))
    beta_p = jnp.pad(beta.reshape(1, Cout).astype(jnp.float32),
                     ((0, 0), (0, Cpad - Cout)))

    tile_m = _pick_tile_m(M)
    grid = (4, M // tile_m)
    inv_count = 1.0 / float(4 * M)         # BN count = N * Ho * Wo

    # ---- pass 1: tiled matmul + BN stats (sequential grid, VMEM accumulators) ----
    y, scale, shift = pl.pallas_call(
        functools.partial(_convt_stats_kernel, inv_count=inv_count),
        grid=grid,
        in_specs=[
            pl.BlockSpec((None, tile_m, K), lambda g, m: (g, m, 0)),   # patches
            pl.BlockSpec((None, K, Cpad), lambda g, m: (g, 0, 0)),     # per-branch weights
            pl.BlockSpec((1, Cpad), lambda g, m: (0, 0)),              # gamma (resident)
            pl.BlockSpec((1, Cpad), lambda g, m: (0, 0)),              # beta (resident)
        ],
        out_specs=(
            pl.BlockSpec((None, tile_m, Cpad), lambda g, m: (g, m, 0)),  # conv output
            pl.BlockSpec((1, Cpad), lambda g, m: (0, 0)),                # BN scale
            pl.BlockSpec((1, Cpad), lambda g, m: (0, 0)),                # BN shift
        ),
        out_shape=(
            jax.ShapeDtypeStruct((4, M, Cpad), jnp.float32),
            jax.ShapeDtypeStruct((1, Cpad), jnp.float32),
            jax.ShapeDtypeStruct((1, Cpad), jnp.float32),
        ),
        scratch_shapes=[pltpu.VMEM((1, Cpad), jnp.float32),
                        pltpu.VMEM((1, Cpad), jnp.float32)],
        compiler_params=pltpu.CompilerParams(
            dimension_semantics=("arbitrary", "arbitrary"),   # stats carried across both axes
            vmem_limit_bytes=_VMEM_LIMIT),
    )(patches, wmats, gamma_p, beta_p)

    # ---- pass 2: normalize (one FMA) + ReLU, fully parallel grid ----
    out = pl.pallas_call(
        _bn_relu_kernel,
        grid=grid,
        in_specs=[
            pl.BlockSpec((None, tile_m, Cpad), lambda g, m: (g, m, 0)),  # y tile
            pl.BlockSpec((1, Cpad), lambda g, m: (0, 0)),                # scale (resident)
            pl.BlockSpec((1, Cpad), lambda g, m: (0, 0)),                # shift (resident)
        ],
        out_specs=pl.BlockSpec((None, tile_m, Cpad), lambda g, m: (g, m, 0)),
        out_shape=jax.ShapeDtypeStruct((4, M, Cpad), jnp.float32),
        compiler_params=pltpu.CompilerParams(
            dimension_semantics=("parallel", "parallel"),
            vmem_limit_bytes=_VMEM_LIMIT),
    )(y, scale, shift)

    # ---- glue: interleave the 4 parity branches back into (N, Cout, 2H, 2W) ----
    o = out[:, :, :Cout].reshape(2, 2, N, H, W, Cout)   # (ph, pw, N, H, W, C)
    o = jnp.transpose(o, (2, 3, 0, 4, 1, 5))            # (N, H, ph, W, pw, C)
    o = o.reshape(N, Ho, Wo, Cout)
    return jnp.transpose(o, (0, 3, 1, 2))               # NCHW


def _reference(x_nchw, w_t, gamma, beta):
    """Pure-JAX reference matching GeneratorBlock.forward (train-mode BN).

    Conv operands are cast to bf16 with f32 accumulation to mirror the kernel's
    deliberate bf16-MXU precision choice; BN / ReLU are computed in f32."""
    w_f = w_t[:, :, ::-1, ::-1]
    w_oihw = jnp.transpose(w_f, (1, 0, 2, 3)).astype(jnp.bfloat16)
    y = lax.conv_general_dilated(
        x_nchw.astype(jnp.bfloat16), w_oihw, window_strides=(1, 1),
        padding=((2, 2), (2, 2)), lhs_dilation=(2, 2),
        dimension_numbers=("NCHW", "OIHW", "NCHW"),
        preferred_element_type=jnp.float32)
    mean = jnp.mean(y, axis=(0, 2, 3), keepdims=True)
    var = jnp.mean(jnp.square(y - mean), axis=(0, 2, 3), keepdims=True)  # biased
    yn = (y - mean) * lax.rsqrt(var + EPS) * gamma.reshape(1, -1, 1, 1) \
        + beta.reshape(1, -1, 1, 1)
    return jnp.maximum(yn, 0.0)


if __name__ == "__main__":
    key = jax.random.PRNGKey(0)
    k1, k2, k3, k4 = jax.random.split(key, 4)

    N, Cin, Cout, H, W, Kk = 2, 4, 8, 16, 16, 4

    x = jax.random.normal(k1, (N, Cin, H, W), jnp.float32)
    # Deterministic synthetic params (shapes per module __init__; no checkpoint load)
    bound = 1.0 / np.sqrt(Cin * Kk * Kk)
    w = jax.random.uniform(k2, (Cin, Cout, Kk, Kk), jnp.float32, -bound, bound)
    gamma = 1.0 + 0.1 * jax.random.normal(k3, (Cout,), jnp.float32)
    beta = 0.1 * jax.random.normal(k4, (Cout,), jnp.float32)

    out = jax.jit(generator_block)(x, w, gamma, beta)
    out = jax.block_until_ready(out)

    ref = _reference(x, w, gamma, beta)
    np.testing.assert_allclose(np.asarray(out), np.asarray(ref), rtol=2e-3, atol=2e-3)

    print("KERNEL_OK")
</pallas_src>

<mosaic_0001>
module attributes {stable_mosaic.version = 11 : i64} {
  func.func @_convt_stats_kernel(%arg0: i32, %arg1: i32, %arg2: memref<1x512x16xbf16, #tpu.memory_space<vmem>>, %arg3: memref<1x16x128xbf16, #tpu.memory_space<vmem>>, %arg4: memref<1x128xf32, #tpu.memory_space<vmem>>, %arg5: memref<1x128xf32, #tpu.memory_space<vmem>>, %arg6: memref<1x512x128xf32, #tpu.memory_space<vmem>>, %arg7: memref<1x128xf32, #tpu.memory_space<vmem>>, %arg8: memref<1x128xf32, #tpu.memory_space<vmem>>, %arg9: memref<1x128xf32, #tpu.memory_space<vmem>>, %arg10: memref<1x128xf32, #tpu.memory_space<vmem>>) attributes {dimension_semantics = [#tpu.dimension_semantics<arbitrary>, #tpu.dimension_semantics<arbitrary>], iteration_bounds = array<i64: 4, 1>, scalar_prefetch = 0 : i64, scratch_operands = 2 : i64, tpu.core_type = #tpu.core_type<tc>, window_params = [{transform_indices = @transform_0, window_bounds = array<i64: 1, 512, 16>}, {transform_indices = @transform_1, window_bounds = array<i64: 1, 16, 128>}, {pipeline_mode = #tpu.pipeline_mode<synchronous>, transform_indices = @transform_2, window_bounds = array<i64: 1, 128>}, {pipeline_mode = #tpu.pipeline_mode<synchronous>, transform_indices = @transform_3, window_bounds = array<i64: 1, 128>}, {transform_indices = @transform_4, window_bounds = array<i64: 1, 512, 128>}, {pipeline_mode = #tpu.pipeline_mode<synchronous>, transform_indices = @transform_5, window_bounds = array<i64: 1, 128>}, {pipeline_mode = #tpu.pipeline_mode<synchronous>, transform_indices = @transform_6, window_bounds = array<i64: 1, 128>}]} {
    %c0_i32 = arith.constant 0 : i32
    %0 = arith.cmpi eq, %arg0, %c0_i32 : i32
    %c0_i32_0 = arith.constant 0 : i32
    %1 = arith.cmpi eq, %arg1, %c0_i32_0 : i32
    %2 = arith.andi %0, %1 : i1
    %3 = arith.extui %2 : i1 to i32
    %c0_i32_1 = arith.constant 0 : i32
    %4 = arith.cmpi ne, %3, %c0_i32_1 : i32
    scf.if %4 {
      %cst_22 = arith.constant 0.000000e+00 : f32
      %29 = vector.broadcast %cst_22 : f32 to vector<1x128xf32>
      %c0_23 = arith.constant 0 : index
      %c0_24 = arith.constant 0 : index
      %30 = vector.load %arg9[%c0_23, %c0_24] : memref<1x128xf32, #tpu.memory_space<vmem>>, vector<1x128xf32>
      tpu.vector_store %arg9[%c0_23, %c0_24], %29 {strides = array<i32>} : memref<1x128xf32, #tpu.memory_space<vmem>>, vector<1x128xf32>,
      %cst_25 = arith.constant 0.000000e+00 : f32
      %31 = vector.broadcast %cst_25 : f32 to vector<1x128xf32>
      %c0_26 = arith.constant 0 : index
      %c0_27 = arith.constant 0 : index
      %32 = vector.load %arg10[%c0_26, %c0_27] : memref<1x128xf32, #tpu.memory_space<vmem>>, vector<1x128xf32>
      tpu.vector_store %arg10[%c0_26, %c0_27], %31 {strides = array<i32>} : memref<1x128xf32, #tpu.memory_space<vmem>>, vector<1x128xf32>,
    } else {
    }
    %c0 = arith.constant 0 : index
    %c0_2 = arith.constant 0 : index
    %c0_3 = arith.constant 0 : index
    %5 = vector.load %arg2[%c0, %c0_2, %c0_3] : memref<1x512x16xbf16, #tpu.memory_space<vmem>>, vector<1x512x16xbf16>
    %6 = vector.shape_cast %5 : vector<1x512x16xbf16> to vector<512x16xbf16>
    %c0_4 = arith.constant 0 : index
    %c0_5 = arith.constant 0 : index
    %c0_6 = arith.constant 0 : index
    %7 = vector.load %arg3[%c0_4, %c0_5, %c0_6] : memref<1x16x128xbf16, #tpu.memory_space<vmem>>, vector<1x16x128xbf16>
    %8 = vector.shape_cast %7 : vector<1x16x128xbf16> to vector<16x128xbf16>
    %cst = arith.constant dense<0.000000e+00> : vector<512x128xf32>
    %9 = tpu.matmul %6, %8, %cst {dimension_numbers = #tpu.dot_dimension_numbers<[1], [0], [0], [1], [0, 0, 1, 1], [], []>} : vector<512x16xbf16>, vector<16x128xbf16>, vector<512x128xf32> -> vector<512x128xf32>
    %c0_7 = arith.constant 0 : index
    %c0_8 = arith.constant 0 : index
    %c0_9 = arith.constant 0 : index
    %10 = vector.load %arg6[%c0_7, %c0_8, %c0_9] : memref<1x512x128xf32, #tpu.memory_space<vmem>>, vector<1x512x128xf32>
    %11 = vector.shape_cast %10 : vector<1x512x128xf32> to vector<512x128xf32>
    %12 = vector.shape_cast %9 : vector<512x128xf32> to vector<1x512x128xf32>
    tpu.vector_store %arg6[%c0_7, %c0_8, %c0_9], %12 {strides = array<i32>} : memref<1x512x128xf32, #tpu.memory_space<vmem>>, vector<1x512x128xf32>,
    %c0_10 = arith.constant 0 : index
    %c0_11 = arith.constant 0 : index
    %13 = vector.load %arg9[%c0_10, %c0_11] : memref<1x128xf32, #tpu.memory_space<vmem>>, vector<1x128xf32>
    %cst_12 = arith.constant dense<0.000000e+00> : vector<128xf32>
    %14 = vector.multi_reduction <add>, %9, %cst_12 [0] : vector<512x128xf32> to vector<128xf32>
    %15 = vector.shape_cast %14 : vector<128xf32> to vector<1x128xf32>
    %16 = arith.addf %13, %15 : vector<1x128xf32>
    %c0_13 = arith.constant 0 : index
    %c0_14 = arith.constant 0 : index
    %17 = vector.load %arg9[%c0_13, %c0_14] : memref<1x128xf32, #tpu.memory_space<vmem>>, vector<1x128xf32>
    tpu.vector_store %arg9[%c0_13, %c0_14], %16 {strides = array<i32>} : memref<1x128xf32, #tpu.memory_space<vmem>>, vector<1x128xf32>,
    %c0_15 = arith.constant 0 : index
    %c0_16 = arith.constant 0 : index
    %18 = vector.load %arg10[%c0_15, %c0_16] : memref<1x128xf32, #tpu.memory_space<vmem>>, vector<1x128xf32>
    %19 = arith.mulf %9, %9 : vector<512x128xf32>
    %cst_17 = arith.constant dense<0.000000e+00> : vector<128xf32>
    %20 = vector.multi_reduction <add>, %19, %cst_17 [0] : vector<512x128xf32> to vector<128xf32>
    %21 = vector.shape_cast %20 : vector<128xf32> to vector<1x128xf32>
    %22 = arith.addf %18, %21 : vector<1x128xf32>
    %c0_18 = arith.constant 0 : index
    %c0_19 = arith.constant 0 : index
    %23 = vector.load %arg10[%c0_18, %c0_19] : memref<1x128xf32, #tpu.memory_space<vmem>>, vector<1x128xf32>
    tpu.vector_store %arg10[%c0_18, %c0_19], %22 {strides = array<i32>} : memref<1x128xf32, #tpu.memory_space<vmem>>, vector<1x128xf32>,
    %c3_i32 = arith.constant 3 : i32
    %24 = arith.cmpi eq, %arg0, %c3_i32 : i32
    %c0_i32_20 = arith.constant 0 : i32
    %25 = arith.cmpi eq, %arg1, %c0_i32_20 : i32
    %26 = arith.andi %24, %25 : i1
    %27 = arith.extui %26 : i1 to i32
    %c0_i32_21 = arith.constant 0 : i32
    %28 = arith.cmpi ne, %27, %c0_i32_21 : i32
    scf.if %28 {
      %c0_22 = arith.constant 0 : index
      %c0_23 = arith.constant 0 : index
      %29 = vector.load %arg9[%c0_22, %c0_23] : memref<1x128xf32, #tpu.memory_space<vmem>>, vector<1x128xf32>
      %cst_24 = arith.constant 4.8828125E-4 : f32
      %30 = vector.broadcast %cst_24 : f32 to vector<1x128xf32>
      %31 = arith.mulf %29, %30 : vector<1x128xf32>
      %c0_25 = arith.constant 0 : index
      %c0_26 = arith.constant 0 : index
      %32 = vector.load %arg10[%c0_25, %c0_26] : memref<1x128xf32, #tpu.memory_space<vmem>>, vector<1x128xf32>
      %cst_27 = arith.constant 4.8828125E-4 : f32
      %33 = vector.broadcast %cst_27 : f32 to vector<1x128xf32>
      %34 = arith.mulf %32, %33 : vector<1x128xf32>
      %35 = arith.mulf %31, %31 : vector<1x128xf32>
      %36 = arith.subf %34, %35 : vector<1x128xf32>
      %cst_28 = arith.constant 0.000000e+00 : f32
      %37 = vector.broadcast %cst_28 : f32 to vector<1x128xf32>
      %38 = arith.maximumf %36, %37 : vector<1x128xf32>
      %cst_29 = arith.constant 9.99999974E-6 : f32
      %39 = vector.broadcast %cst_29 : f32 to vector<1x128xf32>
      %40 = arith.addf %38, %39 : vector<1x128xf32>
      %41 = math.rsqrt %40 : vector<1x128xf32>
      %c0_30 = arith.constant 0 : index
      %c0_31 = arith.constant 0 : index
      %42 = vector.load %arg4[%c0_30, %c0_31] : memref<1x128xf32, #tpu.memory_space<vmem>>, vector<1x128xf32>
      %43 = arith.mulf %42, %41 : vector<1x128xf32>
      %c0_32 = arith.constant 0 : index
      %c0_33 = arith.constant 0 : index
      %44 = vector.load %arg7[%c0_32, %c0_33] : memref<1x128xf32, #tpu.memory_space<vmem>>, vector<1x128xf32>
      tpu.vector_store %arg7[%c0_32, %c0_33], %43 {strides = array<i32>} : memref<1x128xf32, #tpu.memory_space<vmem>>, vector<1x128xf32>,
      %c0_34 = arith.constant 0 : index
      %c0_35 = arith.constant 0 : index
      %45 = vector.load %arg5[%c0_34, %c0_35] : memref<1x128xf32, #tpu.memory_space<vmem>>, vector<1x128xf32>
      %46 = arith.mulf %31, %43 : vector<1x128xf32>
      %47 = arith.subf %45, %46 : vector<1x128xf32>
      %c0_36 = arith.constant 0 : index
      %c0_37 = arith.constant 0 : index
      %48 = vector.load %arg8[%c0_36, %c0_37] : memref<1x128xf32, #tpu.memory_space<vmem>>, vector<1x128xf32>
      tpu.vector_store %arg8[%c0_36, %c0_37], %47 {strides = array<i32>} : memref<1x128xf32, #tpu.memory_space<vmem>>, vector<1x128xf32>,
    } else {
    }
    return
  }
  func.func @transform_0(%arg0: i32, %arg1: i32) -> (i32, i32, i32) {
    %c0_i32 = arith.constant 0 : i32
    %c0_i32_0 = arith.constant 0 : i32
    return %arg0, %arg1, %c0_i32 : i32, i32, i32
  }
  func.func @transform_1(%arg0: i32, %arg1: i32) -> (i32, i32, i32) {
    %c0_i32 = arith.constant 0 : i32
    %c0_i32_0 = arith.constant 0 : i32
    %c0_i32_1 = arith.constant 0 : i32
    return %arg0, %c0_i32, %c0_i32_0 : i32, i32, i32
  }
  func.func @transform_2(%arg0: i32, %arg1: i32) -> (i32, i32) {
    %c0_i32 = arith.constant 0 : i32
    %c0_i32_0 = arith.constant 0 : i32
    %c0_i32_1 = arith.constant 0 : i32
    return %c0_i32, %c0_i32_0 : i32, i32
  }
  func.func @transform_3(%arg0: i32, %arg1: i32) -> (i32, i32) {
    %c0_i32 = arith.constant 0 : i32
    %c0_i32_0 = arith.constant 0 : i32
    %c0_i32_1 = arith.constant 0 : i32
    return %c0_i32, %c0_i32_0 : i32, i32
  }
  func.func @transform_4(%arg0: i32, %arg1: i32) -> (i32, i32, i32) {
    %c0_i32 = arith.constant 0 : i32
    %c0_i32_0 = arith.constant 0 : i32
    return %arg0, %arg1, %c0_i32 : i32, i32, i32
  }
  func.func @transform_5(%arg0: i32, %arg1: i32) -> (i32, i32) {
    %c0_i32 = arith.constant 0 : i32
    %c0_i32_0 = arith.constant 0 : i32
    %c0_i32_1 = arith.constant 0 : i32
    return %c0_i32, %c0_i32_0 : i32, i32
  }
  func.func @transform_6(%arg0: i32, %arg1: i32) -> (i32, i32) {
    %c0_i32 = arith.constant 0 : i32
    %c0_i32_0 = arith.constant 0 : i32
    %c0_i32_1 = arith.constant 0 : i32
    return %c0_i32, %c0_i32_0 : i32, i32
  }
}

module attributes {stable_mosaic.version = 11 : i64} {
  func.func @_bn_relu_kernel(%arg0: i32, %arg1: i32, %arg2: memref<1x512x128xf32, #tpu.memory_space<vmem>>, %arg3: memref<1x128xf32, #tpu.memory_space<vmem>>, %arg4: memref<1x128xf32, #tpu.memory_space<vmem>>, %arg5: memref<1x512x128xf32, #tpu.memory_space<vmem>>) attributes {dimension_semantics = [#tpu.dimension_semantics<parallel>, #tpu.dimension_semantics<parallel>], iteration_bounds = array<i64: 4, 1>, scalar_prefetch = 0 : i64, scratch_operands = 0 : i64, tpu.core_type = #tpu.core_type<tc>, window_params = [{transform_indices = @transform_0, window_bounds = array<i64: 1, 512, 128>}, {pipeline_mode = #tpu.pipeline_mode<synchronous>, transform_indices = @transform_1, window_bounds = array<i64: 1, 128>}, {pipeline_mode = #tpu.pipeline_mode<synchronous>, transform_indices = @transform_2, window_bounds = array<i64: 1, 128>}, {transform_indices = @transform_3, window_bounds = array<i64: 1, 512, 128>}]} {
    %c0 = arith.constant 0 : index
    %c0_0 = arith.constant 0 : index
    %c0_1 = arith.constant 0 : index
    %0 = vector.load %arg2[%c0, %c0_0, %c0_1] : memref<1x512x128xf32, #tpu.memory_space<vmem>>, vector<1x512x128xf32>
    %1 = vector.shape_cast %0 : vector<1x512x128xf32> to vector<512x128xf32>
    %c0_2 = arith.constant 0 : index
    %c0_3 = arith.constant 0 : index
    %2 = vector.load %arg3[%c0_2, %c0_3] : memref<1x128xf32, #tpu.memory_space<vmem>>, vector<1x128xf32>
    %3 = vector.broadcast %2 : vector<1x128xf32> to vector<512x128xf32>
    %4 = arith.mulf %1, %3 : vector<512x128xf32>
    %c0_4 = arith.constant 0 : index
    %c0_5 = arith.constant 0 : index
    %5 = vector.load %arg4[%c0_4, %c0_5] : memref<1x128xf32, #tpu.memory_space<vmem>>, vector<1x128xf32>
    %6 = vector.broadcast %5 : vector<1x128xf32> to vector<512x128xf32>
    %7 = arith.addf %4, %6 : vector<512x128xf32>
    %cst = arith.constant 0.000000e+00 : f32
    %8 = vector.broadcast %cst : f32 to vector<512x128xf32>
    %9 = arith.maximumf %7, %8 : vector<512x128xf32>
    %c0_6 = arith.constant 0 : index
    %c0_7 = arith.constant 0 : index
    %c0_8 = arith.constant 0 : index
    %10 = vector.load %arg5[%c0_6, %c0_7, %c0_8] : memref<1x512x128xf32, #tpu.memory_space<vmem>>, vector<1x512x128xf32>
    %11 = vector.shape_cast %10 : vector<1x512x128xf32> to vector<512x128xf32>
    %12 = vector.shape_cast %9 : vector<512x128xf32> to vector<1x512x128xf32>
    tpu.vector_store %arg5[%c0_6, %c0_7, %c0_8], %12 {strides = array<i32>} : memref<1x512x128xf32, #tpu.memory_space<vmem>>, vector<1x512x128xf32>,
    return
  }
  func.func @transform_0(%arg0: i32, %arg1: i32) -> (i32, i32, i32) {
    %c0_i32 = arith.constant 0 : i32
    %c0_i32_0 = arith.constant 0 : i32
    return %arg0, %arg1, %c0_i32 : i32, i32, i32
  }
  func.func @transform_1(%arg0: i32, %arg1: i32) -> (i32, i32) {
    %c0_i32 = arith.constant 0 : i32
    %c0_i32_0 = arith.constant 0 : i32
    %c0_i32_1 = arith.constant 0 : i32
    return %c0_i32, %c0_i32_0 : i32, i32
  }
  func.func @transform_2(%arg0: i32, %arg1: i32) -> (i32, i32) {
    %c0_i32 = arith.constant 0 : i32
    %c0_i32_0 = arith.constant 0 : i32
    %c0_i32_1 = arith.constant 0 : i32
    return %c0_i32, %c0_i32_0 : i32, i32
  }
  func.func @transform_3(%arg0: i32, %arg1: i32) -> (i32, i32, i32) {
    %c0_i32 = arith.constant 0 : i32
    %c0_i32_0 = arith.constant 0 : i32
    return %arg0, %arg1, %c0_i32 : i32, i32, i32
  }
}

</mosaic_0001>

<llo_original>
// kernel: generator_block.3
$region0: #{generator_block.3}
  #allocation0 [shape = 'u32[]', space=smem, size = 0x4, offset = 0x4, fixed_abs, tag = 'smem constant byte address 0x4 - core index']
  #allocation1 [shape = 'u32[144,128]{1,0:T(1,128)}', space=vmem, size = 0x12000, scoped, tag = 'internal scratch']
  %s0 = inlined_call_operand.vmem [shape: f32[4,512,128], index: 0, kind: input, shape index: {}]
  %s1 = inlined_call_operand.vmem [shape: f32[1,128], index: 1, kind: input, shape index: {}]
  %s2 = inlined_call_operand.vmem [shape: f32[1,128], index: 2, kind: input, shape index: {}]
  %s3 = inlined_call_operand.vmem [shape: f32[4,512,128], index: 3, kind: output, shape index: {}]
  %s4 = sld [smem:[#allocation0]]
  $region45: #{generator_block.3} parent=0
    _
  %s6 = ssub.s32 1, %s4
  %s7 = scalar_select 0, %s6, %s4
  loop: start=0, step=1, limit=6
  $region2: #{generator_block.3} parent=0 // loop_pre_header
    _
  $region3: #{generator_block.3} parent=0 // loop_header
    %s9 = sphi 0, %s13
    %p10 = scmp.ge.s32.totalorder %s9, 6
    %s16 = sphi 0, %s28
    %s17 = sphi 0, %s24
    %s18 = sphi 0, %s16
    %s19 = sphi 0, %s17
    %s20 = sphi 0, %s18
    %s21 = sphi 0, %s19
    %s33 = sphi 0, %s35
    %s36 = sphi 0, %s33
    %s37 = sphi 0, %s36
    %s53 = sphi 0, %s37
    %s57 = sphi 0, %s57
    %s59 = sphi 0, %s57
    %s60 = sphi 0, %s59
    %s74 = sphi 0, %s60
    %s78 = sphi 0, %s78
    %s80 = sphi 0, %s78
    %s81 = sphi 0, %s80
    %s95 = sphi 0, %s81
    %s103 = sphi 0, %s105
    %s106 = sphi 0, %s103
    %s107 = sphi 0, %s106
    %s123 = sphi 0, %s107
  $region4: #{generator_block.3} parent=0 // loop_header_branch
    %12 = sbr.rel (%p10) target = $region8
  $region5: #{generator_block.3} parent=0 // loop_body
    %s14 = ssub.s32 %s9, 1
    %s15 = ssub.s32 %s9, 2
    %s22 = sadd.s32 1, %s17
    %p23 = scmp.ge.s32.totalorder %s22, 1
    %s24 = scalar_select %p23, 0, %s22
    %s25 = sadd.s32 1, %s16
    %s26 = scalar_select %p23, %s25, %s16
    %p27 = scmp.ge.s32.totalorder %s26, 4
    %s28 = scalar_select %p27, 0, %s26
    %s29 = ssub.s32 %s16, %s28
    %s30 = ssub.s32 %s17, %s24
    %s31 = sor.u32 %s29, %s30
    %p32 = scmp.eq.s32.totalorder %s31, 0
    %s34 = sadd.s32 %s33, 1
    %s35 = scalar_select %p32, %s33, %s34
    %p38 = pneg %p32
    %p39 = scmp.eq.s32.totalorder %s9, 3
    %p40 = por %p38, %p39
    %p41 = scmp.ne.s32.totalorder %s33, %s36
    %p42 = scmp.eq.s32.totalorder %s9, 0
    %p43 = por %p41, %p42
    %p44 = scmp.ne.s32.totalorder %s33, %s36
    %p45 = scmp.eq.s32.totalorder %s14, 3
    %p46 = por %p44, %p45
    %p47 = scmp.ne.s32.totalorder %s36, %s37
    %p48 = scmp.eq.s32.totalorder %s14, 0
    %p49 = por %p47, %p48
    %p50 = scmp.ne.s32.totalorder %s36, %s37
    %p51 = scmp.eq.s32.totalorder %s15, 3
    %p52 = por %p50, %p51
    %p54 = scmp.ne.s32.totalorder %s37, %s53
    %p55 = scmp.eq.s32.totalorder %s15, 0
    %p56 = por %p54, %p55
    %s58 = sadd.s32 %s57, 1
    %p61 = scmp.eq.s32.totalorder %s9, 3
    %p62 = scmp.ne.s32.totalorder %s57, %s59
    %p63 = scmp.eq.s32.totalorder %s9, 0
    %p64 = por %p62, %p63
    %p65 = scmp.ne.s32.totalorder %s57, %s59
    %p66 = scmp.eq.s32.totalorder %s14, 3
    %p67 = por %p65, %p66
    %p68 = scmp.ne.s32.totalorder %s59, %s60
    %p69 = scmp.eq.s32.totalorder %s14, 0
    %p70 = por %p68, %p69
    %p71 = scmp.ne.s32.totalorder %s59, %s60
    %p72 = scmp.eq.s32.totalorder %s15, 3
    %p73 = por %p71, %p72
    %p75 = scmp.ne.s32.totalorder %s60, %s74
    %p76 = scmp.eq.s32.totalorder %s15, 0
    %p77 = por %p75, %p76
    %s79 = sadd.s32 %s78, 1
    %p82 = scmp.eq.s32.totalorder %s9, 3
    %p83 = scmp.ne.s32.totalorder %s78, %s80
    %p84 = scmp.eq.s32.totalorder %s9, 0
    %p85 = por %p83, %p84
    %p86 = scmp.ne.s32.totalorder %s78, %s80
    %p87 = scmp.eq.s32.totalorder %s14, 3
    %p88 = por %p86, %p87
    %p89 = scmp.ne.s32.totalorder %s80, %s81
    %p90 = scmp.eq.s32.totalorder %s14, 0
    %p91 = por %p89, %p90
    %p92 = scmp.ne.s32.totalorder %s80, %s81
    %p93 = scmp.eq.s32.totalorder %s15, 3
    %p94 = por %p92, %p93
    %p96 = scmp.ne.s32.totalorder %s81, %s95
    %p97 = scmp.eq.s32.totalorder %s15, 0
    %p98 = por %p96, %p97
    %s99 = ssub.s32 %s16, %s28
    %s100 = ssub.s32 %s17, %s24
    %s101 = sor.u32 %s99, %s100
    %p102 = scmp.eq.s32.totalorder %s101, 0
    %s104 = sadd.s32 %s103, 1
    %s105 = scalar_select %p102, %s103, %s104
    %p108 = pneg %p102
    %p109 = scmp.eq.s32.totalorder %s9, 3
    %p110 = por %p108, %p109
    %p111 = scmp.ne.s32.totalorder %s103, %s106
    %p112 = scmp.eq.s32.totalorder %s9, 0
    %p113 = por %p111, %p112
    %p114 = scmp.ne.s32.totalorder %s103, %s106
    %p115 = scmp.eq.s32.totalorder %s14, 3
    %p116 = por %p114, %p115
    %p117 = scmp.ne.s32.totalorder %s106, %s107
    %p118 = scmp.eq.s32.totalorder %s14, 0
    %p119 = por %p117, %p118
    %p120 = scmp.ne.s32.totalorder %s106, %s107
    %p121 = scmp.eq.s32.totalorder %s15, 3
    %p122 = por %p120, %p121
    %p124 = scmp.ne.s32.totalorder %s107, %s123
    %p125 = scmp.eq.s32.totalorder %s15, 0
    %p126 = por %p124, %p125
    %p127 = scmp.le.s32.totalorder 1, %s9
    %p128 = scmp.lt.s32.totalorder %s9, 5
    %p129 = pnand %p127, %p128
    %p130 = pneg %p129
    // Predicated region
    $region9: #{generator_block.3} parent=5 // pred_check
      _
    $region10: #{generator_block.3} parent=5 // pred_check_branch
      %132 = sbr.rel (%p129) target = $region12
    $region11: #{generator_block.3} parent=5 // pred_region
      %s133 = ssub.s32 %s9, 1
      // Predicated region
      $region13: #{generator_block.3} parent=11 // pred_check
        %p134 = pneg %p70
      $region14: #{generator_block.3} parent=11 // pred_check_branch
        %136 = sbr.rel (%p134) target = $region16
      $region15: #{generator_block.3} parent=11 // pred_region
        _
      $region16: #{generator_block.3} parent=11 // pred_fallthru
        _
      // Predicated region
      $region17: #{generator_block.3} parent=11 // pred_check
        %p137 = pneg %p91
      $region18: #{generator_block.3} parent=11 // pred_check_branch
        %139 = sbr.rel (%p137) target = $region20
      $region19: #{generator_block.3} parent=11 // pred_region
        _
      $region20: #{generator_block.3} parent=11 // pred_fallthru
        _
    $region12: #{generator_block.3} parent=5 // pred_fallthru
      _
    %p140 = scmp.lt.s32.totalorder %s9, 4
    // Predicated region
    $region21: #{generator_block.3} parent=5 // pred_check
      %p141 = pneg %p140
    $region22: #{generator_block.3} parent=5 // pred_check_branch
      %143 = sbr.rel (%p141) target = $region24
    $region23: #{generator_block.3} parent=5 // pred_region
      // Predicated region
      $region25: #{generator_block.3} parent=23 // pred_check
        %p144 = pneg %p43
      $region26: #{generator_block.3} parent=23 // pred_check_branch
        %146 = sbr.rel (%p144) target = $region28
      $region27: #{generator_block.3} parent=23 // pred_region
        %s147 = smul.u32 64, %s17
        %p148 = scmp.lt.s32.totalorder %s16, 3
        %s149 = scalar_select %p148, %s16, 3
        %p150 = scmp.lt.s32.totalorder %s147, 63
        %s151 = scalar_select %p150, %s147, 63
        %s152 = smul.addr %s149, 64
        %s153 = sadd.s32 %s151, %s152
        %s154 = smul.addr %s153, 8
        %s155 = scalar_lea.vmem %s0, %s154
        %s156 = smul.u32 64, %s17
      $region28: #{generator_block.3} parent=23 // pred_fallthru
        _
    $region24: #{generator_block.3} parent=5 // pred_fallthru
      _
    %p157 = scmp.le.s32.totalorder 1, %s9
    %p158 = scmp.lt.s32.totalorder %s9, 5
    %p159 = pnand %p157, %p158
    %p160 = pneg %p159
    // Predicated region
    $region29: #{generator_block.3} parent=5 // pred_check
      _
    $region30: #{generator_block.3} parent=5 // pred_check_branch
      %162 = sbr.rel (%p159) target = $region32
    $region31: #{generator_block.3} parent=5 // pred_region
      %s163 = ssub.s32 %s9, 1
      %s164 = smul.u32 64, %s19
      %p165 = scmp.lt.s32.totalorder %s18, 3
      %s166 = scalar_select %p165, %s18, 3
      %p167 = scmp.lt.s32.totalorder %s164, 63
      %s168 = scalar_select %p167, %s164, 63
      %s169 = smul.addr %s166, 64
      %s170 = sadd.s32 %s168, %s169
      %s171 = smul.addr %s170, 8
      %s172 = scalar_lea.vmem %s0, %s171
      %p173 = pneg %p49
      %p174 = pneg %p46
      %p175 = pneg %p70
      %p176 = pneg %p67
      %p177 = pneg %p91
      %p178 = pneg %p88
      %p179 = pneg %p119
      %p180 = pneg %p116
      %s181 = smul.u32 64, %s19
      %p182 = scmp.lt.s32.totalorder %s18, 3
      %s183 = scalar_select %p182, %s18, 3
      %p184 = scmp.lt.s32.totalorder %s181, 63
      %s185 = scalar_select %p184, %s181, 63
      %s186 = smul.addr %s183, 64
      %s187 = sadd.s32 %s185, %s186
      %s188 = smul.addr %s187, 8
      %s189 = scalar_lea.vmem %s3, %s188
      %s190 = smul.u32 64, %s19
      %p191 = scmp.lt.s32.totalorder %s18, 3
      %s192 = scalar_select %p191, %s18, 3
      %p193 = scmp.lt.s32.totalorder %s190, 63
      %s194 = scalar_select %p193, %s190, 63
      %s195 = smul.addr %s192, 64
      %s196 = sadd.s32 %s194, %s195
      %s197 = smul.addr %s196, 8
      %s198 = scalar_lea.vmem %s0, %s197
      %s199 = smul.u32 64, %s19
      %s200 = smul.u32 64, %s19
      %p201 = scmp.lt.s32.totalorder %s18, 3
      %s202 = scalar_select %p201, %s18, 3
      %p203 = scmp.lt.s32.totalorder %s200, 63
      %s204 = scalar_select %p203, %s200, 63
      %s205 = smul.addr %s202, 64
      %s206 = sadd.s32 %s204, %s205
      %s207 = smul.addr %s206, 8
      %s208 = scalar_lea.vmem %s3, %s207
      %s209 = smul.u32 64, %s19
      %v210 = vld [vmem:[%s198] sm:$0xff]
      %v211 = vld [vmem:[%s198 + $0x8] sm:$0xff]
      %v212 = vld [vmem:[%s198 + $0x10] sm:$0xff]
      %v213 = vld [vmem:[%s198 + $0x18] sm:$0xff]
      %v214 = vld [vmem:[%s198 + $0x20] sm:$0xff]
      %v215 = vld [vmem:[%s198 + $0x28] sm:$0xff]
      %v216 = vld [vmem:[%s198 + $0x30] sm:$0xff]
      %v217 = vld [vmem:[%s198 + $0x38] sm:$0xff]
      %v218 = vld [vmem:[%s198 + $0x40] sm:$0xff]
      %v219 = vld [vmem:[%s198 + $0x48] sm:$0xff]
      %v220 = vld [vmem:[%s198 + $0x50] sm:$0xff]
      %v221 = vld [vmem:[%s198 + $0x58] sm:$0xff]
      %v222 = vld [vmem:[%s198 + $0x60] sm:$0xff]
      %v223 = vld [vmem:[%s198 + $0x68] sm:$0xff]
      %v224 = vld [vmem:[%s198 + $0x70] sm:$0xff]
      %v225 = vld [vmem:[%s198 + $0x78] sm:$0xff]
      %v226 = vld [vmem:[%s198 + $0x80] sm:$0xff]
      %v227 = vld [vmem:[%s198 + $0x88] sm:$0xff]
      %v228 = vld [vmem:[%s198 + $0x90] sm:$0xff]
      %v229 = vld [vmem:[%s198 + $0x98] sm:$0xff]
      %v230 = vld [vmem:[%s198 + $0xa0] sm:$0xff]
      %v231 = vld [vmem:[%s198 + $0xa8] sm:$0xff]
      %v232 = vld [vmem:[%s198 + $0xb0] sm:$0xff]
      %v233 = vld [vmem:[%s198 + $0xb8] sm:$0xff]
      %v234 = vld [vmem:[%s198 + $0xc0] sm:$0xff]
      %v235 = vld [vmem:[%s198 + $0xc8] sm:$0xff]
      %v236 = vld [vmem:[%s198 + $0xd0] sm:$0xff]
      %v237 = vld [vmem:[%s198 + $0xd8] sm:$0xff]
      %v238 = vld [vmem:[%s198 + $0xe0] sm:$0xff]
      %v239 = vld [vmem:[%s198 + $0xe8] sm:$0xff]
      %v240 = vld [vmem:[%s198 + $0xf0] sm:$0xff]
      %v241 = vld [vmem:[%s198 + $0xf8] sm:$0xff]
      %v242 = vld [vmem:[%s198 + $0x100] sm:$0xff]
      %v243 = vld [vmem:[%s198 + $0x108] sm:$0xff]
      %v244 = vld [vmem:[%s198 + $0x110] sm:$0xff]
      %v245 = vld [vmem:[%s198 + $0x118] sm:$0xff]
      %v246 = vld [vmem:[%s198 + $0x120] sm:$0xff]
      %v247 = vld [vmem:[%s198 + $0x128] sm:$0xff]
      %v248 = vld [vmem:[%s198 + $0x130] sm:$0xff]
      %v249 = vld [vmem:[%s198 + $0x138] sm:$0xff]
      %v250 = vld [vmem:[%s198 + $0x140] sm:$0xff]
      %v251 = vld [vmem:[%s198 + $0x148] sm:$0xff]
      %v252 = vld [vmem:[%s198 + $0x150] sm:$0xff]
      %v253 = vld [vmem:[%s198 + $0x158] sm:$0xff]
      %v254 = vld [vmem:[%s198 + $0x160] sm:$0xff]
      %v255 = vld [vmem:[%s198 + $0x168] sm:$0xff]
      %v256 = vld [vmem:[%s198 + $0x170] sm:$0xff]
      %v257 = vld [vmem:[%s198 + $0x178] sm:$0xff]
      %v258 = vld [vmem:[%s198 + $0x180] sm:$0xff]
      %v259 = vld [vmem:[%s198 + $0x188] sm:$0xff]
      %v260 = vld [vmem:[%s198 + $0x190] sm:$0xff]
      %v261 = vld [vmem:[%s198 + $0x198] sm:$0xff]
      %v262 = vld [vmem:[%s198 + $0x1a0] sm:$0xff]
      %v263 = vld [vmem:[%s198 + $0x1a8] sm:$0xff]
      %v264 = vld [vmem:[%s198 + $0x1b0] sm:$0xff]
      %v265 = vld [vmem:[%s198 + $0x1b8] sm:$0xff]
      %v266 = vld [vmem:[%s198 + $0x1c0] sm:$0xff]
      %v267 = vld [vmem:[%s198 + $0x1c8] sm:$0xff]
      %v268 = vld [vmem:[%s198 + $0x1d0] sm:$0xff]
      %v269 = vld [vmem:[%s198 + $0x1d8] sm:$0xff]
      %v270 = vld [vmem:[%s198 + $0x1e0] sm:$0xff]
      %v271 = vld [vmem:[%s198 + $0x1e8] sm:$0xff]
      %v272 = vld [vmem:[%s198 + $0x1f0] sm:$0xff]
      %v273 = vld [vmem:[%s198 + $0x1f8] sm:$0xff]
      %v274 = vld [vmem:[%s1] sm:$0x1]
      %v276 = vlaneseq
      %v277 = vshrl.u32 %v276, 7
      %v278 = vsub.s32 0, %v277
      %v279 = vrot.slane %v274, %v278
      %v281 = vmul.f32 %v210, %v279
      %v282 = vmul.f32 %v211, %v279
      %v283 = vmul.f32 %v212, %v279
      %v284 = vmul.f32 %v213, %v279
      %v285 = vmul.f32 %v214, %v279
      %v286 = vmul.f32 %v215, %v279
      %v287 = vmul.f32 %v216, %v279
      %v288 = vmul.f32 %v217, %v279
      %v289 = vmul.f32 %v218, %v279
      %v290 = vmul.f32 %v219, %v279
      %v291 = vmul.f32 %v220, %v279
      %v292 = vmul.f32 %v221, %v279
      %v293 = vmul.f32 %v222, %v279
      %v294 = vmul.f32 %v223, %v279
      %v295 = vmul.f32 %v224, %v279
      %v296 = vmul.f32 %v225, %v279
      %v297 = vmul.f32 %v226, %v279
      %v298 = vmul.f32 %v227, %v279
      %v299 = vmul.f32 %v228, %v279
      %v300 = vmul.f32 %v229, %v279
      %v301 = vmul.f32 %v230, %v279
      %v302 = vmul.f32 %v231, %v279
      %v303 = vmul.f32 %v232, %v279
      %v304 = vmul.f32 %v233, %v279
      %v305 = vmul.f32 %v234, %v279
      %v306 = vmul.f32 %v235, %v279
      %v307 = vmul.f32 %v236, %v279
      %v308 = vmul.f32 %v237, %v279
      %v309 = vmul.f32 %v238, %v279
      %v310 = vmul.f32 %v239, %v279
      %v311 = vmul.f32 %v240, %v279
      %v312 = vmul.f32 %v241, %v279
      %v313 = vmul.f32 %v242, %v279
      %v314 = vmul.f32 %v243, %v279
      %v315 = vmul.f32 %v244, %v279
      %v316 = vmul.f32 %v245, %v279
      %v317 = vmul.f32 %v246, %v279
      %v318 = vmul.f32 %v247, %v279
      %v319 = vmul.f32 %v248, %v279
      %v320 = vmul.f32 %v249, %v279
      %v321 = vmul.f32 %v250, %v279
      %v322 = vmul.f32 %v251, %v279
      %v323 = vmul.f32 %v252, %v279
      %v324 = vmul.f32 %v253, %v279
      %v325 = vmul.f32 %v254, %v279
      %v326 = vmul.f32 %v255, %v279
      %v327 = vmul.f32 %v256, %v279
      %v328 = vmul.f32 %v257, %v279
      %v329 = vmul.f32 %v258, %v279
      %v330 = vmul.f32 %v259, %v279
      %v331 = vmul.f32 %v260, %v279
      %v332 = vmul.f32 %v261, %v279
      %v333 = vmul.f32 %v262, %v279
      %v334 = vmul.f32 %v263, %v279
      %v335 = vmul.f32 %v264, %v279
      %v336 = vmul.f32 %v265, %v279
      %v337 = vmul.f32 %v266, %v279
      %v338 = vmul.f32 %v267, %v279
      %v339 = vmul.f32 %v268, %v279
      %v340 = vmul.f32 %v269, %v279
      %v341 = vmul.f32 %v270, %v279
      %v342 = vmul.f32 %v271, %v279
      %v343 = vmul.f32 %v272, %v279
      %v344 = vmul.f32 %v273, %v279
      %v345 = vld [vmem:[%s2] sm:$0x1]
      %v347 = vlaneseq
      %v348 = vshrl.u32 %v347, 7
      %v349 = vsub.s32 0, %v348
      %v350 = vrot.slane %v345, %v349
      %v352 = vadd.f32 %v281, %v350
      %v353 = vadd.f32 %v282, %v350
      %v354 = vadd.f32 %v283, %v350
      %v355 = vadd.f32 %v284, %v350
      %v356 = vadd.f32 %v285, %v350
      %v357 = vadd.f32 %v286, %v350
      %v358 = vadd.f32 %v287, %v350
      %v359 = vadd.f32 %v288, %v350
      %v360 = vadd.f32 %v289, %v350
      %v361 = vadd.f32 %v290, %v350
      %v362 = vadd.f32 %v291, %v350
      %v363 = vadd.f32 %v292, %v350
      %v364 = vadd.f32 %v293, %v350
      %v365 = vadd.f32 %v294, %v350
      %v366 = vadd.f32 %v295, %v350
      %v367 = vadd.f32 %v296, %v350
      %v368 = vadd.f32 %v297, %v350
      %v369 = vadd.f32 %v298, %v350
      %v370 = vadd.f32 %v299, %v350
      %v371 = vadd.f32 %v300, %v350
      %v372 = vadd.f32 %v301, %v350
      %v373 = vadd.f32 %v302, %v350
      %v374 = vadd.f32 %v303, %v350
      %v375 = vadd.f32 %v304, %v350
      %v376 = vadd.f32 %v305, %v350
      %v377 = vadd.f32 %v306, %v350
      %v378 = vadd.f32 %v307, %v350
      %v379 = vadd.f32 %v308, %v350
      %v380 = vadd.f32 %v309, %v350
      %v381 = vadd.f32 %v310, %v350
      %v382 = vadd.f32 %v311, %v350
      %v383 = vadd.f32 %v312, %v350
      %v384 = vadd.f32 %v313, %v350
      %v385 = vadd.f32 %v314, %v350
      %v386 = vadd.f32 %v315, %v350
      %v387 = vadd.f32 %v316, %v350
      %v388 = vadd.f32 %v317, %v350
      %v389 = vadd.f32 %v318, %v350
      %v390 = vadd.f32 %v319, %v350
      %v391 = vadd.f32 %v320, %v350
      %v392 = vadd.f32 %v321, %v350
      %v393 = vadd.f32 %v322, %v350
      %v394 = vadd.f32 %v323, %v350
      %v395 = vadd.f32 %v324, %v350
      %v396 = vadd.f32 %v325, %v350
      %v397 = vadd.f32 %v326, %v350
      %v398 = vadd.f32 %v327, %v350
      %v399 = vadd.f32 %v328, %v350
      %v400 = vadd.f32 %v329, %v350
      %v401 = vadd.f32 %v330, %v350
      %v402 = vadd.f32 %v331, %v350
      %v403 = vadd.f32 %v332, %v350
      %v404 = vadd.f32 %v333, %v350
      %v405 = vadd.f32 %v334, %v350
      %v406 = vadd.f32 %v335, %v350
      %v407 = vadd.f32 %v336, %v350
      %v408 = vadd.f32 %v337, %v350
      %v409 = vadd.f32 %v338, %v350
      %v410 = vadd.f32 %v339, %v350
      %v411 = vadd.f32 %v340, %v350
      %v412 = vadd.f32 %v341, %v350
      %v413 = vadd.f32 %v342, %v350
      %v414 = vadd.f32 %v343, %v350
      %v415 = vadd.f32 %v344, %v350
      %v416 = vmax.f32 %v352, 0.0
      %v417 = vmax.f32 %v353, 0.0
      %v418 = vmax.f32 %v354, 0.0
      %v419 = vmax.f32 %v355, 0.0
      %v420 = vmax.f32 %v356, 0.0
      %v421 = vmax.f32 %v357, 0.0
      %v422 = vmax.f32 %v358, 0.0
      %v423 = vmax.f32 %v359, 0.0
      %v424 = vmax.f32 %v360, 0.0
      %v425 = vmax.f32 %v361, 0.0
      %v426 = vmax.f32 %v362, 0.0
      %v427 = vmax.f32 %v363, 0.0
      %v428 = vmax.f32 %v364, 0.0
      %v429 = vmax.f32 %v365, 0.0
      %v430 = vmax.f32 %v366, 0.0
      %v431 = vmax.f32 %v367, 0.0
      %v432 = vmax.f32 %v368, 0.0
      %v433 = vmax.f32 %v369, 0.0
      %v434 = vmax.f32 %v370, 0.0
      %v435 = vmax.f32 %v371, 0.0
      %v436 = vmax.f32 %v372, 0.0
      %v437 = vmax.f32 %v373, 0.0
      %v438 = vmax.f32 %v374, 0.0
      %v439 = vmax.f32 %v375, 0.0
      %v440 = vmax.f32 %v376, 0.0
      %v441 = vmax.f32 %v377, 0.0
      %v442 = vmax.f32 %v378, 0.0
      %v443 = vmax.f32 %v379, 0.0
      %v444 = vmax.f32 %v380, 0.0
      %v445 = vmax.f32 %v381, 0.0
      %v446 = vmax.f32 %v382, 0.0
      %v447 = vmax.f32 %v383, 0.0
      %v448 = vmax.f32 %v384, 0.0
      %v449 = vmax.f32 %v385, 0.0
      %v450 = vmax.f32 %v386, 0.0
      %v451 = vmax.f32 %v387, 0.0
      %v452 = vmax.f32 %v388, 0.0
      %v453 = vmax.f32 %v389, 0.0
      %v454 = vmax.f32 %v390, 0.0
      %v455 = vmax.f32 %v391, 0.0
      %v456 = vmax.f32 %v392, 0.0
      %v457 = vmax.f32 %v393, 0.0
      %v458 = vmax.f32 %v394, 0.0
      %v459 = vmax.f32 %v395, 0.0
      %v460 = vmax.f32 %v396, 0.0
      %v461 = vmax.f32 %v397, 0.0
      %v462 = vmax.f32 %v398, 0.0
      %v463 = vmax.f32 %v399, 0.0
      %v464 = vmax.f32 %v400, 0.0
      %v465 = vmax.f32 %v401, 0.0
      %v466 = vmax.f32 %v402, 0.0
      %v467 = vmax.f32 %v403, 0.0
      %v468 = vmax.f32 %v404, 0.0
      %v469 = vmax.f32 %v405, 0.0
      %v470 = vmax.f32 %v406, 0.0
      %v471 = vmax.f32 %v407, 0.0
      %v472 = vmax.f32 %v408, 0.0
      %v473 = vmax.f32 %v409, 0.0
      %v474 = vmax.f32 %v410, 0.0
      %v475 = vmax.f32 %v411, 0.0
      %v476 = vmax.f32 %v412, 0.0
      %v477 = vmax.f32 %v413, 0.0
      %v478 = vmax.f32 %v414, 0.0
      %v479 = vmax.f32 %v415, 0.0
      %480 = vst [vmem:[%s208] sm:$0xff] %v416
      %481 = vst [vmem:[%s208 + $0x8] sm:$0xff] %v417
      %482 = vst [vmem:[%s208 + $0x10] sm:$0xff] %v418
      %483 = vst [vmem:[%s208 + $0x18] sm:$0xff] %v419
      %484 = vst [vmem:[%s208 + $0x20] sm:$0xff] %v420
      %485 = vst [vmem:[%s208 + $0x28] sm:$0xff] %v421
      %486 = vst [vmem:[%s208 + $0x30] sm:$0xff] %v422
      %487 = vst [vmem:[%s208 + $0x38] sm:$0xff] %v423
      %488 = vst [vmem:[%s208 + $0x40] sm:$0xff] %v424
      %489 = vst [vmem:[%s208 + $0x48] sm:$0xff] %v425
      %490 = vst [vmem:[%s208 + $0x50] sm:$0xff] %v426
      %491 = vst [vmem:[%s208 + $0x58] sm:$0xff] %v427
      %492 = vst [vmem:[%s208 + $0x60] sm:$0xff] %v428
      %493 = vst [vmem:[%s208 + $0x68] sm:$0xff] %v429
      %494 = vst [vmem:[%s208 + $0x70] sm:$0xff] %v430
      %495 = vst [vmem:[%s208 + $0x78] sm:$0xff] %v431
      %496 = vst [vmem:[%s208 + $0x80] sm:$0xff] %v432
      %497 = vst [vmem:[%s208 + $0x88] sm:$0xff] %v433
      %498 = vst [vmem:[%s208 + $0x90] sm:$0xff] %v434
      %499 = vst [vmem:[%s208 + $0x98] sm:$0xff] %v435
      %500 = vst [vmem:[%s208 + $0xa0] sm:$0xff] %v436
      %501 = vst [vmem:[%s208 + $0xa8] sm:$0xff] %v437
      %502 = vst [vmem:[%s208 + $0xb0] sm:$0xff] %v438
      %503 = vst [vmem:[%s208 + $0xb8] sm:$0xff] %v439
      %504 = vst [vmem:[%s208 + $0xc0] sm:$0xff] %v440
      %505 = vst [vmem:[%s208 + $0xc8] sm:$0xff] %v441
      %506 = vst [vmem:[%s208 + $0xd0] sm:$0xff] %v442
      %507 = vst [vmem:[%s208 + $0xd8] sm:$0xff] %v443
      %508 = vst [vmem:[%s208 + $0xe0] sm:$0xff] %v444
      %509 = vst [vmem:[%s208 + $0xe8] sm:$0xff] %v445
      %510 = vst [vmem:[%s208 + $0xf0] sm:$0xff] %v446
      %511 = vst [vmem:[%s208 + $0xf8] sm:$0xff] %v447
      %512 = vst [vmem:[%s208 + $0x100] sm:$0xff] %v448
      %513 = vst [vmem:[%s208 + $0x108] sm:$0xff] %v449
      %514 = vst [vmem:[%s208 + $0x110] sm:$0xff] %v450
      %515 = vst [vmem:[%s208 + $0x118] sm:$0xff] %v451
      %516 = vst [vmem:[%s208 + $0x120] sm:$0xff] %v452
      %517 = vst [vmem:[%s208 + $0x128] sm:$0xff] %v453
      %518 = vst [vmem:[%s208 + $0x130] sm:$0xff] %v454
      %519 = vst [vmem:[%s208 + $0x138] sm:$0xff] %v455
      %520 = vst [vmem:[%s208 + $0x140] sm:$0xff] %v456
      %521 = vst [vmem:[%s208 + $0x148] sm:$0xff] %v457
      %522 = vst [vmem:[%s208 + $0x150] sm:$0xff] %v458
      %523 = vst [vmem:[%s208 + $0x158] sm:$0xff] %v459
      %524 = vst [vmem:[%s208 + $0x160] sm:$0xff] %v460
      %525 = vst [vmem:[%s208 + $0x168] sm:$0xff] %v461
      %526 = vst [vmem:[%s208 + $0x170] sm:$0xff] %v462
      %527 = vst [vmem:[%s208 + $0x178] sm:$0xff] %v463
      %528 = vst [vmem:[%s208 + $0x180] sm:$0xff] %v464
      %529 = vst [vmem:[%s208 + $0x188] sm:$0xff] %v465
      %530 = vst [vmem:[%s208 + $0x190] sm:$0xff] %v466
      %531 = vst [vmem:[%s208 + $0x198] sm:$0xff] %v467
      %532 = vst [vmem:[%s208 + $0x1a0] sm:$0xff] %v468
      %533 = vst [vmem:[%s208 + $0x1a8] sm:$0xff] %v469
      %534 = vst [vmem:[%s208 + $0x1b0] sm:$0xff] %v470
      %535 = vst [vmem:[%s208 + $0x1b8] sm:$0xff] %v471
      %536 = vst [vmem:[%s208 + $0x1c0] sm:$0xff] %v472
      %537 = vst [vmem:[%s208 + $0x1c8] sm:$0xff] %v473
      %538 = vst [vmem:[%s208 + $0x1d0] sm:$0xff] %v474
      %539 = vst [vmem:[%s208 + $0x1d8] sm:$0xff] %v475
      %540 = vst [vmem:[%s208 + $0x1e0] sm:$0xff] %v476
      %541 = vst [vmem:[%s208 + $0x1e8] sm:$0xff] %v477
      %542 = vst [vmem:[%s208 + $0x1f0] sm:$0xff] %v478
      %543 = vst [vmem:[%s208 + $0x1f8] sm:$0xff] %v479
      %s544 = smul.u32 64, %s19
      %p545 = scmp.lt.s32.totalorder %s18, 3
      %s546 = scalar_select %p545, %s18, 3
      %p547 = scmp.lt.s32.totalorder %s544, 63
      %s548 = scalar_select %p547, %s544, 63
      %s549 = smul.addr %s546, 64
      %s550 = sadd.s32 %s548, %s549
      %s551 = smul.addr %s550, 8
      %s552 = scalar_lea.vmem %s3, %s551
      // Predicated region
      $region33: #{generator_block.3} parent=31 // pred_check
        %p553 = pneg %p116
      $region34: #{generator_block.3} parent=31 // pred_check_branch
        %555 = sbr.rel (%p553) target = $region36
      $region35: #{generator_block.3} parent=31 // pred_region
        %s556 = smul.u32 64, %s19
      $region36: #{generator_block.3} parent=31 // pred_fallthru
        _
    $region32: #{generator_block.3} parent=5 // pred_fallthru
      _
    %p557 = scmp.le.s32.totalorder 2, %s9
    // Predicated region
    $region37: #{generator_block.3} parent=5 // pred_check
      %p558 = pneg %p557
    $region38: #{generator_block.3} parent=5 // pred_check_branch
      %560 = sbr.rel (%p558) target = $region40
    $region39: #{generator_block.3} parent=5 // pred_region
      %s561 = ssub.s32 %s9, 2
      // Predicated region
      $region41: #{generator_block.3} parent=39 // pred_check
        %p562 = pneg %p122
      $region42: #{generator_block.3} parent=39 // pred_check_branch
        %564 = sbr.rel (%p562) target = $region44
      $region43: #{generator_block.3} parent=39 // pred_region
        %s565 = smul.u32 64, %s21
        %p566 = scmp.lt.s32.totalorder %s20, 3
        %s567 = scalar_select %p566, %s20, 3
        %p568 = scmp.lt.s32.totalorder %s565, 63
        %s569 = scalar_select %p568, %s565, 63
        %s570 = smul.addr %s567, 64
        %s571 = sadd.s32 %s569, %s570
        %s572 = smul.addr %s571, 8
        %s573 = scalar_lea.vmem %s3, %s572
      $region44: #{generator_block.3} parent=39 // pred_fallthru
        _
    $region40: #{generator_block.3} parent=5 // pred_fallthru
      _
  $region6: #{generator_block.3} parent=0 // loop_footer
    %s13 = sadd.s32 1, %s9
  $region7: #{generator_block.3} parent=0 // loop_footer_branch
    %8 = sbr.rel target = $region3
  $region8: #{generator_block.3} parent=0 // loop_exit
    _

// kernel: generator_block.2
$region0: #{generator_block.2}
  #allocation0 [shape = 'u32[]', space=smem, size = 0x4, offset = 0x4, fixed_abs, tag = 'smem constant byte address 0x4 - core index']
  #allocation1 [shape = 'u32[144,128]{1,0:T(1,128)}', space=vmem, size = 0x12000, scoped, tag = 'internal scratch']
  #allocation2 [shape = 'f32[1,128]{1,0:T(1,128)}', space=vmem, size = 0x200, scoped, tag = 'scratch operand']
  #allocation3 [shape = 'f32[1,128]{1,0:T(1,128)}', space=vmem, size = 0x200, scoped, tag = 'scratch operand']
  %s0 = inlined_call_operand.vmem [shape: bf16[4,512,16], index: 0, kind: input, shape index: {}]
  %s1 = inlined_call_operand.vmem [shape: bf16[4,16,128], index: 1, kind: input, shape index: {}]
  %s2 = inlined_call_operand.vmem [shape: f32[1,128], index: 2, kind: input, shape index: {}]
  %s3 = inlined_call_operand.vmem [shape: f32[1,128], index: 3, kind: input, shape index: {}]
  %s4 = inlined_call_operand.vmem [shape: f32[4,512,128], index: 4, kind: output, shape index: {0}]
  %s5 = inlined_call_operand.vmem [shape: f32[1,128], index: 5, kind: output, shape index: {1}]
  %s6 = inlined_call_operand.vmem [shape: f32[1,128], index: 6, kind: output, shape index: {2}]
  %7 = xla_tuple %s4, %s5, %s6
  %s8 = sld [smem:[#allocation0]]
  $region73: #{generator_block.2} parent=0
    _
  %s10 = ssub.s32 1, %s8
  %s11 = scalar_select 0, %s10, %s8
  loop: start=0, step=1, limit=6
  $region2: #{generator_block.2} parent=0 // loop_pre_header
    _
  $region3: #{generator_block.2} parent=0 // loop_header
    %s13 = sphi 0, %s17
    %p14 = scmp.ge.s32.totalorder %s13, 6
    %s20 = sphi 0, %s32
    %s21 = sphi 0, %s28
    %s22 = sphi 0, %s20
    %s23 = sphi 0, %s21
    %s24 = sphi 0, %s22
    %s25 = sphi 0, %s23
    %s37 = sphi 0, %s39
    %s40 = sphi 0, %s37
    %s41 = sphi 0, %s40
    %s57 = sphi 0, %s41
    %s63 = sphi 0, %s65
    %s66 = sphi 0, %s63
    %s67 = sphi 0, %s66
    %s83 = sphi 0, %s67
    %s87 = sphi 0, %s87
    %s89 = sphi 0, %s87
    %s90 = sphi 0, %s89
    %s104 = sphi 0, %s90
    %s108 = sphi 0, %s108
    %s110 = sphi 0, %s108
    %s111 = sphi 0, %s110
    %s125 = sphi 0, %s111
    %s133 = sphi 0, %s135
    %s136 = sphi 0, %s133
    %s137 = sphi 0, %s136
    %s153 = sphi 0, %s137
    %s157 = sphi 0, %s157
    %s159 = sphi 0, %s157
    %s160 = sphi 0, %s159
    %s174 = sphi 0, %s160
    %s178 = sphi 0, %s178
    %s180 = sphi 0, %s178
    %s181 = sphi 0, %s180
    %s195 = sphi 0, %s181
  $region4: #{generator_block.2} parent=0 // loop_header_branch
    %16 = sbr.rel (%p14) target = $region8
  $region5: #{generator_block.2} parent=0 // loop_body
    %s18 = ssub.s32 %s13, 1
    %s19 = ssub.s32 %s13, 2
    %s26 = sadd.s32 1, %s21
    %p27 = scmp.ge.s32.totalorder %s26, 1
    %s28 = scalar_select %p27, 0, %s26
    %s29 = sadd.s32 1, %s20
    %s30 = scalar_select %p27, %s29, %s20
    %p31 = scmp.ge.s32.totalorder %s30, 4
    %s32 = scalar_select %p31, 0, %s30
    %s33 = ssub.s32 %s20, %s32
    %s34 = ssub.s32 %s21, %s28
    %s35 = sor.u32 %s33, %s34
    %p36 = scmp.eq.s32.totalorder %s35, 0
    %s38 = sadd.s32 %s37, 1
    %s39 = scalar_select %p36, %s37, %s38
    %p42 = pneg %p36
    %p43 = scmp.eq.s32.totalorder %s13, 3
    %p44 = por %p42, %p43
    %p45 = scmp.ne.s32.totalorder %s37, %s40
    %p46 = scmp.eq.s32.totalorder %s13, 0
    %p47 = por %p45, %p46
    %p48 = scmp.ne.s32.totalorder %s37, %s40
    %p49 = scmp.eq.s32.totalorder %s18, 3
    %p50 = por %p48, %p49
    %p51 = scmp.ne.s32.totalorder %s40, %s41
    %p52 = scmp.eq.s32.totalorder %s18, 0
    %p53 = por %p51, %p52
    %p54 = scmp.ne.s32.totalorder %s40, %s41
    %p55 = scmp.eq.s32.totalorder %s19, 3
    %p56 = por %p54, %p55
    %p58 = scmp.ne.s32.totalorder %s41, %s57
    %p59 = scmp.eq.s32.totalorder %s19, 0
    %p60 = por %p58, %p59
    %s61 = ssub.s32 %s20, %s32
    %p62 = scmp.eq.s32.totalorder %s61, 0
    %s64 = sadd.s32 %s63, 1
    %s65 = scalar_select %p62, %s63, %s64
    %p68 = pneg %p62
    %p69 = scmp.eq.s32.totalorder %s13, 3
    %p70 = por %p68, %p69
    %p71 = scmp.ne.s32.totalorder %s63, %s66
    %p72 = scmp.eq.s32.totalorder %s13, 0
    %p73 = por %p71, %p72
    %p74 = scmp.ne.s32.totalorder %s63, %s66
    %p75 = scmp.eq.s32.totalorder %s18, 3
    %p76 = por %p74, %p75
    %p77 = scmp.ne.s32.totalorder %s66, %s67
    %p78 = scmp.eq.s32.totalorder %s18, 0
    %p79 = por %p77, %p78
    %p80 = scmp.ne.s32.totalorder %s66, %s67
    %p81 = scmp.eq.s32.totalorder %s19, 3
    %p82 = por %p80, %p81
    %p84 = scmp.ne.s32.totalorder %s67, %s83
    %p85 = scmp.eq.s32.totalorder %s19, 0
    %p86 = por %p84, %p85
    %s88 = sadd.s32 %s87, 1
    %p91 = scmp.eq.s32.totalorder %s13, 3
    %p92 = scmp.ne.s32.totalorder %s87, %s89
    %p93 = scmp.eq.s32.totalorder %s13, 0
    %p94 = por %p92, %p93
    %p95 = scmp.ne.s32.totalorder %s87, %s89
    %p96 = scmp.eq.s32.totalorder %s18, 3
    %p97 = por %p95, %p96
    %p98 = scmp.ne.s32.totalorder %s89, %s90
    %p99 = scmp.eq.s32.totalorder %s18, 0
    %p100 = por %p98, %p99
    %p101 = scmp.ne.s32.totalorder %s89, %s90
    %p102 = scmp.eq.s32.totalorder %s19, 3
    %p103 = por %p101, %p102
    %p105 = scmp.ne.s32.totalorder %s90, %s104
    %p106 = scmp.eq.s32.totalorder %s19, 0
    %p107 = por %p105, %p106
    %s109 = sadd.s32 %s108, 1
    %p112 = scmp.eq.s32.totalorder %s13, 3
    %p113 = scmp.ne.s32.totalorder %s108, %s110
    %p114 = scmp.eq.s32.totalorder %s13, 0
    %p115 = por %p113, %p114
    %p116 = scmp.ne.s32.totalorder %s108, %s110
    %p117 = scmp.eq.s32.totalorder %s18, 3
    %p118 = por %p116, %p117
    %p119 = scmp.ne.s32.totalorder %s110, %s111
    %p120 = scmp.eq.s32.totalorder %s18, 0
    %p121 = por %p119, %p120
    %p122 = scmp.ne.s32.totalorder %s110, %s111
    %p123 = scmp.eq.s32.totalorder %s19, 3
    %p124 = por %p122, %p123
    %p126 = scmp.ne.s32.totalorder %s111, %s125
    %p127 = scmp.eq.s32.totalorder %s19, 0
    %p128 = por %p126, %p127
    %s129 = ssub.s32 %s20, %s32
    %s130 = ssub.s32 %s21, %s28
    %s131 = sor.u32 %s129, %s130
    %p132 = scmp.eq.s32.totalorder %s131, 0
    %s134 = sadd.s32 %s133, 1
    %s135 = scalar_select %p132, %s133, %s134
    %p138 = pneg %p132
    %p139 = scmp.eq.s32.totalorder %s13, 3
    %p140 = por %p138, %p139
    %p141 = scmp.ne.s32.totalorder %s133, %s136
    %p142 = scmp.eq.s32.totalorder %s13, 0
    %p143 = por %p141, %p142
    %p144 = scmp.ne.s32.totalorder %s133, %s136
    %p145 = scmp.eq.s32.totalorder %s18, 3
    %p146 = por %p144, %p145
    %p147 = scmp.ne.s32.totalorder %s136, %s137
    %p148 = scmp.eq.s32.totalorder %s18, 0
    %p149 = por %p147, %p148
    %p150 = scmp.ne.s32.totalorder %s136, %s137
    %p151 = scmp.eq.s32.totalorder %s19, 3
    %p152 = por %p150, %p151
    %p154 = scmp.ne.s32.totalorder %s137, %s153
    %p155 = scmp.eq.s32.totalorder %s19, 0
    %p156 = por %p154, %p155
    %s158 = sadd.s32 %s157, 1
    %p161 = scmp.eq.s32.totalorder %s13, 3
    %p162 = scmp.ne.s32.totalorder %s157, %s159
    %p163 = scmp.eq.s32.totalorder %s13, 0
    %p164 = por %p162, %p163
    %p165 = scmp.ne.s32.totalorder %s157, %s159
    %p166 = scmp.eq.s32.totalorder %s18, 3
    %p167 = por %p165, %p166
    %p168 = scmp.ne.s32.totalorder %s159, %s160
    %p169 = scmp.eq.s32.totalorder %s18, 0
    %p170 = por %p168, %p169
    %p171 = scmp.ne.s32.totalorder %s159, %s160
    %p172 = scmp.eq.s32.totalorder %s19, 3
    %p173 = por %p171, %p172
    %p175 = scmp.ne.s32.totalorder %s160, %s174
    %p176 = scmp.eq.s32.totalorder %s19, 0
    %p177 = por %p175, %p176
    %s179 = sadd.s32 %s178, 1
    %p182 = scmp.eq.s32.totalorder %s13, 3
    %p183 = scmp.ne.s32.totalorder %s178, %s180
    %p184 = scmp.eq.s32.totalorder %s13, 0
    %p185 = por %p183, %p184
    %p186 = scmp.ne.s32.totalorder %s178, %s180
    %p187 = scmp.eq.s32.totalorder %s18, 3
    %p188 = por %p186, %p187
    %p189 = scmp.ne.s32.totalorder %s180, %s181
    %p190 = scmp.eq.s32.totalorder %s18, 0
    %p191 = por %p189, %p190
    %p192 = scmp.ne.s32.totalorder %s180, %s181
    %p193 = scmp.eq.s32.totalorder %s19, 3
    %p194 = por %p192, %p193
    %p196 = scmp.ne.s32.totalorder %s181, %s195
    %p197 = scmp.eq.s32.totalorder %s19, 0
    %p198 = por %p196, %p197
    %p199 = scmp.le.s32.totalorder 1, %s13
    %p200 = scmp.lt.s32.totalorder %s13, 5
    %p201 = pnand %p199, %p200
    %p202 = pneg %p201
    // Predicated region
    $region9: #{generator_block.2} parent=5 // pred_check
      _
    $region10: #{generator_block.2} parent=5 // pred_check_branch
      %204 = sbr.rel (%p201) target = $region12
    $region11: #{generator_block.2} parent=5 // pred_region
      %s205 = ssub.s32 %s13, 1
      // Predicated region
      $region13: #{generator_block.2} parent=11 // pred_check
        %p206 = pneg %p100
      $region14: #{generator_block.2} parent=11 // pred_check_branch
        %208 = sbr.rel (%p206) target = $region16
      $region15: #{generator_block.2} parent=11 // pred_region
        _
      $region16: #{generator_block.2} parent=11 // pred_fallthru
        _
      // Predicated region
      $region17: #{generator_block.2} parent=11 // pred_check
        %p209 = pneg %p121
      $region18: #{generator_block.2} parent=11 // pred_check_branch
        %211 = sbr.rel (%p209) target = $region20
      $region19: #{generator_block.2} parent=11 // pred_region
        _
      $region20: #{generator_block.2} parent=11 // pred_fallthru
        _
    $region12: #{generator_block.2} parent=5 // pred_fallthru
      _
    %p212 = scmp.lt.s32.totalorder %s13, 4
    // Predicated region
    $region21: #{generator_block.2} parent=5 // pred_check
      %p213 = pneg %p212
    $region22: #{generator_block.2} parent=5 // pred_check_branch
      %215 = sbr.rel (%p213) target = $region24
    $region23: #{generator_block.2} parent=5 // pred_region
      // Predicated region
      $region25: #{generator_block.2} parent=23 // pred_check
        %p216 = pneg %p47
      $region26: #{generator_block.2} parent=23 // pred_check_branch
        %218 = sbr.rel (%p216) target = $region28
      $region27: #{generator_block.2} parent=23 // pred_region
        %s219 = smul.u32 64, %s21
        %p220 = scmp.lt.s32.totalorder %s20, 3
        %s221 = scalar_select %p220, %s20, 3
        %p222 = scmp.lt.s32.totalorder %s219, 63
        %s223 = scalar_select %p222, %s219, 63
        %s224 = smul.addr %s221, 64
        %s225 = sadd.s32 %s223, %s224
        %s226 = smul.addr %s225, 4
        %s227 = scalar_lea.vmem %s0, %s226
        %s228 = smul.u32 64, %s21
      $region28: #{generator_block.2} parent=23 // pred_fallthru
        _
      // Predicated region
      $region29: #{generator_block.2} parent=23 // pred_check
        %p229 = pneg %p73
      $region30: #{generator_block.2} parent=23 // pred_check_branch
        %231 = sbr.rel (%p229) target = $region32
      $region31: #{generator_block.2} parent=23 // pred_region
        %p232 = scmp.lt.s32.totalorder %s20, 3
        %s233 = scalar_select %p232, %s20, 3
        %s234 = smul.addr %s233, 2
        %s235 = smul.addr %s234, 4
        %s236 = scalar_lea.vmem %s1, %s235
      $region32: #{generator_block.2} parent=23 // pred_fallthru
        _
    $region24: #{generator_block.2} parent=5 // pred_fallthru
      _
    %p237 = scmp.le.s32.totalorder 1, %s13
    %p238 = scmp.lt.s32.totalorder %s13, 5
    %p239 = pnand %p237, %p238
    %p240 = pneg %p239
    // Predicated region
    $region33: #{generator_block.2} parent=5 // pred_check
      _
    $region34: #{generator_block.2} parent=5 // pred_check_branch
      %242 = sbr.rel (%p239) target = $region36
    $region35: #{generator_block.2} parent=5 // pred_region
      %s243 = ssub.s32 %s13, 1
      %s244 = smul.u32 64, %s23
      %p245 = scmp.lt.s32.totalorder %s22, 3
      %s246 = scalar_select %p245, %s22, 3
      %p247 = scmp.lt.s32.totalorder %s244, 63
      %s248 = scalar_select %p247, %s244, 63
      %s249 = smul.addr %s246, 64
      %s250 = sadd.s32 %s248, %s249
      %s251 = smul.addr %s250, 4
      %s252 = scalar_lea.vmem %s0, %s251
      %p253 = pneg %p53
      %p254 = pneg %p50
      %p255 = scmp.lt.s32.totalorder %s22, 3
      %s256 = scalar_select %p255, %s22, 3
      %s257 = smul.addr %s256, 2
      %s258 = smul.addr %s257, 4
      %s259 = scalar_lea.vmem %s1, %s258
      %p260 = pneg %p79
      %p261 = pneg %p76
      %p262 = pneg %p100
      %p263 = pneg %p97
      %p264 = pneg %p121
      %p265 = pneg %p118
      %p266 = pneg %p149
      %p267 = pneg %p146
      %s268 = smul.u32 64, %s23
      %p269 = scmp.lt.s32.totalorder %s22, 3
      %s270 = scalar_select %p269, %s22, 3
      %p271 = scmp.lt.s32.totalorder %s268, 63
      %s272 = scalar_select %p271, %s268, 63
      %s273 = smul.addr %s270, 64
      %s274 = sadd.s32 %s272, %s273
      %s275 = smul.addr %s274, 8
      %s276 = scalar_lea.vmem %s4, %s275
      %p277 = pneg %p170
      %p278 = pneg %p167
      %p279 = pneg %p191
      %p280 = pneg %p188
      %s281 = smul.u32 64, %s23
      %p282 = scmp.lt.s32.totalorder %s22, 3
      %s283 = scalar_select %p282, %s22, 3
      %p284 = scmp.lt.s32.totalorder %s281, 63
      %s285 = scalar_select %p284, %s281, 63
      %s286 = smul.addr %s283, 64
      %s287 = sadd.s32 %s285, %s286
      %s288 = smul.addr %s287, 4
      %s289 = scalar_lea.vmem %s0, %s288
      %s290 = smul.u32 64, %s23
      %p291 = scmp.lt.s32.totalorder %s22, 3
      %s292 = scalar_select %p291, %s22, 3
      %s293 = smul.addr %s292, 2
      %s294 = smul.addr %s293, 4
      %s295 = scalar_lea.vmem %s1, %s294
      %s296 = smul.u32 64, %s23
      %p297 = scmp.lt.s32.totalorder %s22, 3
      %s298 = scalar_select %p297, %s22, 3
      %p299 = scmp.lt.s32.totalorder %s296, 63
      %s300 = scalar_select %p299, %s296, 63
      %s301 = smul.addr %s298, 64
      %s302 = sadd.s32 %s300, %s301
      %s303 = smul.addr %s302, 8
      %s304 = scalar_lea.vmem %s4, %s303
      %s305 = smul.u32 64, %s23
      %p307 = scmp.eq.s32.totalorder %s22, 0
      %p308 = scmp.eq.s32.totalorder %s23, 0
      %p309 = pnand %p307, %p308
      %p310 = pneg %p309
      // Predicated region
      $region37: #{generator_block.2} parent=35 // pred_check
        _
      $region38: #{generator_block.2} parent=35 // pred_check_branch
        %312 = sbr.rel (%p309) target = $region40
      $region39: #{generator_block.2} parent=35 // pred_region
        %313 = vst [vmem:[#allocation2] sm:$0x1] 0.0
        %314 = vst [vmem:[#allocation3] sm:$0x1] 0.0
      $region40: #{generator_block.2} parent=35 // pred_fallthru
        _
      %v315 = vld [vmem:[%s289] sm:$0xf]
      %v316 = vld [vmem:[%s289 + $0x4] sm:$0xf]
      %v317 = vld [vmem:[%s289 + $0x8] sm:$0xf]
      %v318 = vld [vmem:[%s289 + $0xc] sm:$0xf]
      %v319 = vld [vmem:[%s289 + $0x10] sm:$0xf]
      %v320 = vld [vmem:[%s289 + $0x14] sm:$0xf]
      %v321 = vld [vmem:[%s289 + $0x18] sm:$0xf]
      %v322 = vld [vmem:[%s289 + $0x1c] sm:$0xf]
      %v323 = vld [vmem:[%s289 + $0x20] sm:$0xf]
      %v324 = vld [vmem:[%s289 + $0x24] sm:$0xf]
      %v325 = vld [vmem:[%s289 + $0x28] sm:$0xf]
      %v326 = vld [vmem:[%s289 + $0x2c] sm:$0xf]
      %v327 = vld [vmem:[%s289 + $0x30] sm:$0xf]
      %v328 = vld [vmem:[%s289 + $0x34] sm:$0xf]
      %v329 = vld [vmem:[%s289 + $0x38] sm:$0xf]
      %v330 = vld [vmem:[%s289 + $0x3c] sm:$0xf]
      %v331 = vld [vmem:[%s289 + $0x40] sm:$0xf]
      %v332 = vld [vmem:[%s289 + $0x44] sm:$0xf]
      %v333 = vld [vmem:[%s289 + $0x48] sm:$0xf]
      %v334 = vld [vmem:[%s289 + $0x4c] sm:$0xf]
      %v335 = vld [vmem:[%s289 + $0x50] sm:$0xf]
      %v336 = vld [vmem:[%s289 + $0x54] sm:$0xf]
      %v337 = vld [vmem:[%s289 + $0x58] sm:$0xf]
      %v338 = vld [vmem:[%s289 + $0x5c] sm:$0xf]
      %v339 = vld [vmem:[%s289 + $0x60] sm:$0xf]
      %v340 = vld [vmem:[%s289 + $0x64] sm:$0xf]
      %v341 = vld [vmem:[%s289 + $0x68] sm:$0xf]
      %v342 = vld [vmem:[%s289 + $0x6c] sm:$0xf]
      %v343 = vld [vmem:[%s289 + $0x70] sm:$0xf]
      %v344 = vld [vmem:[%s289 + $0x74] sm:$0xf]
      %v345 = vld [vmem:[%s289 + $0x78] sm:$0xf]
      %v346 = vld [vmem:[%s289 + $0x7c] sm:$0xf]
      %v347 = vld [vmem:[%s289 + $0x80] sm:$0xf]
      %v348 = vld [vmem:[%s289 + $0x84] sm:$0xf]
      %v349 = vld [vmem:[%s289 + $0x88] sm:$0xf]
      %v350 = vld [vmem:[%s289 + $0x8c] sm:$0xf]
      %v351 = vld [vmem:[%s289 + $0x90] sm:$0xf]
      %v352 = vld [vmem:[%s289 + $0x94] sm:$0xf]
      %v353 = vld [vmem:[%s289 + $0x98] sm:$0xf]
      %v354 = vld [vmem:[%s289 + $0x9c] sm:$0xf]
      %v355 = vld [vmem:[%s289 + $0xa0] sm:$0xf]
      %v356 = vld [vmem:[%s289 + $0xa4] sm:$0xf]
      %v357 = vld [vmem:[%s289 + $0xa8] sm:$0xf]
      %v358 = vld [vmem:[%s289 + $0xac] sm:$0xf]
      %v359 = vld [vmem:[%s289 + $0xb0] sm:$0xf]
      %v360 = vld [vmem:[%s289 + $0xb4] sm:$0xf]
      %v361 = vld [vmem:[%s289 + $0xb8] sm:$0xf]
      %v362 = vld [vmem:[%s289 + $0xbc] sm:$0xf]
      %v363 = vld [vmem:[%s289 + $0xc0] sm:$0xf]
      %v364 = vld [vmem:[%s289 + $0xc4] sm:$0xf]
      %v365 = vld [vmem:[%s289 + $0xc8] sm:$0xf]
      %v366 = vld [vmem:[%s289 + $0xcc] sm:$0xf]
      %v367 = vld [vmem:[%s289 + $0xd0] sm:$0xf]
      %v368 = vld [vmem:[%s289 + $0xd4] sm:$0xf]
      %v369 = vld [vmem:[%s289 + $0xd8] sm:$0xf]
      %v370 = vld [vmem:[%s289 + $0xdc] sm:$0xf]
      %v371 = vld [vmem:[%s289 + $0xe0] sm:$0xf]
      %v372 = vld [vmem:[%s289 + $0xe4] sm:$0xf]
      %v373 = vld [vmem:[%s289 + $0xe8] sm:$0xf]
      %v374 = vld [vmem:[%s289 + $0xec] sm:$0xf]
      %v375 = vld [vmem:[%s289 + $0xf0] sm:$0xf]
      %v376 = vld [vmem:[%s289 + $0xf4] sm:$0xf]
      %v377 = vld [vmem:[%s289 + $0xf8] sm:$0xf]
      %v378 = vld [vmem:[%s289 + $0xfc] sm:$0xf]
      %v379 = vld [vmem:[%s295] sm:$0xf]
      %v380 = vld [vmem:[%s295 + $0x4] sm:$0xf]
      %v445 = vunpack.c.l.b16 %v315
      %v446 = vunpack.c.l.b16 %v316
      %v447 = vunpack.c.l.b16 %v317
      %v448 = vunpack.c.l.b16 %v318
      %v449 = vunpack.c.l.b16 %v319
      %v450 = vunpack.c.l.b16 %v320
      %v451 = vunpack.c.l.b16 %v321
      %v452 = vunpack.c.l.b16 %v322
      %v453 = vunpack.c.l.b16 %v323
      %v454 = vunpack.c.l.b16 %v324
      %v455 = vunpack.c.l.b16 %v325
      %v456 = vunpack.c.l.b16 %v326
      %v457 = vunpack.c.l.b16 %v327
      %v458 = vunpack.c.l.b16 %v328
      %v459 = vunpack.c.l.b16 %v329
      %v460 = vunpack.c.l.b16 %v330
      %v461 = vunpack.c.l.b16 %v331
      %v462 = vunpack.c.l.b16 %v332
      %v463 = vunpack.c.l.b16 %v333
      %v464 = vunpack.c.l.b16 %v334
      %v465 = vunpack.c.l.b16 %v335
      %v466 = vunpack.c.l.b16 %v336
      %v467 = vunpack.c.l.b16 %v337
      %v468 = vunpack.c.l.b16 %v338
      %v469 = vunpack.c.l.b16 %v339
      %v470 = vunpack.c.l.b16 %v340
      %v471 = vunpack.c.l.b16 %v341
      %v472 = vunpack.c.l.b16 %v342
      %v473 = vunpack.c.l.b16 %v343
      %v474 = vunpack.c.l.b16 %v344
      %v475 = vunpack.c.l.b16 %v345
      %v476 = vunpack.c.l.b16 %v346
      %v477 = vunpack.c.l.b16 %v347
      %v478 = vunpack.c.l.b16 %v348
      %v479 = vunpack.c.l.b16 %v349
      %v480 = vunpack.c.l.b16 %v350
      %v481 = vunpack.c.l.b16 %v351
      %v482 = vunpack.c.l.b16 %v352
      %v483 = vunpack.c.l.b16 %v353
      %v484 = vunpack.c.l.b16 %v354
      %v485 = vunpack.c.l.b16 %v355
      %v486 = vunpack.c.l.b16 %v356
      %v487 = vunpack.c.l.b16 %v357
      %v488 = vunpack.c.l.b16 %v358
      %v489 = vunpack.c.l.b16 %v359
      %v490 = vunpack.c.l.b16 %v360
      %v491 = vunpack.c.l.b16 %v361
      %v492 = vunpack.c.l.b16 %v362
      %v493 = vunpack.c.l.b16 %v363
      %v494 = vunpack.c.l.b16 %v364
      %v495 = vunpack.c.l.b16 %v365
      %v496 = vunpack.c.l.b16 %v366
      %v497 = vunpack.c.l.b16 %v367
      %v498 = vunpack.c.l.b16 %v368
      %v499 = vunpack.c.l.b16 %v369
      %v500 = vunpack.c.l.b16 %v370
      %v501 = vunpack.c.l.b16 %v371
      %v502 = vunpack.c.l.b16 %v372
      %v503 = vunpack.c.l.b16 %v373
      %v504 = vunpack.c.l.b16 %v374
      %v505 = vunpack.c.l.b16 %v375
      %v506 = vunpack.c.l.b16 %v376
      %v507 = vunpack.c.l.b16 %v377
      %v508 = vunpack.c.l.b16 %v378
      %v509 = vpack.c.b16 %v446, %v445
      %v510 = vpack.c.b16 %v448, %v447
      %v511 = vpack.c.b16 %v450, %v449
      %v512 = vpack.c.b16 %v452, %v451
      %v513 = vpack.c.b16 %v454, %v453
      %v514 = vpack.c.b16 %v456, %v455
      %v515 = vpack.c.b16 %v458, %v457
      %v516 = vpack.c.b16 %v460, %v459
      %v517 = vpack.c.b16 %v462, %v461
      %v518 = vpack.c.b16 %v464, %v463
      %v519 = vpack.c.b16 %v466, %v465
      %v520 = vpack.c.b16 %v468, %v467
      %v521 = vpack.c.b16 %v470, %v469
      %v522 = vpack.c.b16 %v472, %v471
      %v523 = vpack.c.b16 %v474, %v473
      %v524 = vpack.c.b16 %v476, %v475
      %v525 = vpack.c.b16 %v478, %v477
      %v526 = vpack.c.b16 %v480, %v479
      %v527 = vpack.c.b16 %v482, %v481
      %v528 = vpack.c.b16 %v484, %v483
      %v529 = vpack.c.b16 %v486, %v485
      %v530 = vpack.c.b16 %v488, %v487
      %v531 = vpack.c.b16 %v490, %v489
      %v532 = vpack.c.b16 %v492, %v491
      %v533 = vpack.c.b16 %v494, %v493
      %v534 = vpack.c.b16 %v496, %v495
      %v535 = vpack.c.b16 %v498, %v497
      %v536 = vpack.c.b16 %v500, %v499
      %v537 = vpack.c.b16 %v502, %v501
      %v538 = vpack.c.b16 %v504, %v503
      %v539 = vpack.c.b16 %v506, %v505
      %v540 = vpack.c.b16 %v508, %v507
      %v543 = vunpack.c.l.b16 %v379
      %v544 = vunpack.c.l.b16 %v380
      %v545 = vpack.c.b16 %v544, %v543
      %vm547 = vcmask 130048
      %v549 = vsel %vm547, %v509, 0
      %v552 = vsel %vm547, %v510, 0
      %v555 = vsel %vm547, %v511, 0
      %v558 = vsel %vm547, %v512, 0
      %v561 = vsel %vm547, %v513, 0
      %v564 = vsel %vm547, %v514, 0
      %v567 = vsel %vm547, %v515, 0
      %v570 = vsel %vm547, %v516, 0
      %v573 = vsel %vm547, %v517, 0
      %v576 = vsel %vm547, %v518, 0
      %v579 = vsel %vm547, %v519, 0
      %v582 = vsel %vm547, %v520, 0
      %v585 = vsel %vm547, %v521, 0
      %v588 = vsel %vm547, %v522, 0
      %v591 = vsel %vm547, %v523, 0
      %v594 = vsel %vm547, %v524, 0
      %v597 = vsel %vm547, %v525, 0
      %v600 = vsel %vm547, %v526, 0
      %v603 = vsel %vm547, %v527, 0
      %v606 = vsel %vm547, %v528, 0
      %v609 = vsel %vm547, %v529, 0
      %v612 = vsel %vm547, %v530, 0
      %v615 = vsel %vm547, %v531, 0
      %v618 = vsel %vm547, %v532, 0
      %v621 = vsel %vm547, %v533, 0
      %v624 = vsel %vm547, %v534, 0
      %v627 = vsel %vm547, %v535, 0
      %v630 = vsel %vm547, %v536, 0
      %v633 = vsel %vm547, %v537, 0
      %v636 = vsel %vm547, %v538, 0
      %v639 = vsel %vm547, %v539, 0
      %v642 = vsel %vm547, %v540, 0
      %644 = vmatprep.subr.bf16.mxu0 0
      %645 = vmatpush1.bf16.msra.mxu0 %v545
      %646 = vmatprep.subr.bf16.mxu0 0
      %647 = vmatpush1.bf16.msra.mxu0 0
      %648 = vmatprep.subr.bf16.mxu0 0
      %649 = vmatpush1.bf16.msra.mxu0 0
      %650 = vmatprep.subr.bf16.mxu0 0
      %651 = vmatpush1.bf16.msra.mxu0 0
      %652 = vmatprep.subr.bf16.mxu0 0
      %653 = vmatpush1.bf16.msra.mxu0 0
      %654 = vmatprep.subr.bf16.mxu0 0
      %655 = vmatpush1.bf16.msra.mxu0 0
      %656 = vmatprep.subr.bf16.mxu0 0
      %657 = vmatpush1.bf16.msra.mxu0 0
      %658 = vmatprep.subr.bf16.mxu0 0
      %659 = vmatpush1.bf16.msra.mxu0 0
      %660 = vmatprep.subr.bf16.mxu0 0
      %661 = vmatpush1.bf16.msra.mxu0 0
      %662 = vmatprep.subr.bf16.mxu0 0
      %663 = vmatpush1.bf16.msra.mxu0 0
      %664 = vmatprep.subr.bf16.mxu0 0
      %665 = vmatpush1.bf16.msra.mxu0 0
      %666 = vmatprep.subr.bf16.mxu0 0
      %667 = vmatpush1.bf16.msra.mxu0 0
      %668 = vmatprep.subr.bf16.mxu0 0
      %669 = vmatpush1.bf16.msra.mxu0 0
      %670 = vmatprep.subr.bf16.mxu0 0
      %671 = vmatpush1.bf16.msra.mxu0 0
      %672 = vmatprep.subr.bf16.mxu0 0
      %673 = vmatpush1.bf16.msra.mxu0 0
      %674 = vmatprep.subr.bf16.mxu0 0
      %675 = vmatpush1.bf16.msra.mxu0 0
      %676 = vmatprep.mubr.bf16.mxu0 0
      %677 = vmatmul.mubr.bf16.gmra.mrb[0].mxu0 %v549
      %v678 = vpop.f32.mrb[0].mxu0
      %v679 = vadd.f32 0.0, %v678
      %v680 = vpop.f32.mrb[0].mxu0
      %v681 = vpop.f32.mrb[0].mxu0
      %v682 = vadd.f32 0.0, %v681
      %v683 = vpop.f32.mrb[0].mxu0
      %684 = vmatprep.mubr.bf16.mxu0 0
      %685 = vmatmul.mubr.bf16.gmra.mrb[0].mxu0 %v552
      %v686 = vpop.f32.mrb[0].mxu0
      %v687 = vadd.f32 0.0, %v686
      %v688 = vpop.f32.mrb[0].mxu0
      %v689 = vpop.f32.mrb[0].mxu0
      %v690 = vadd.f32 0.0, %v689
      %v691 = vpop.f32.mrb[0].mxu0
      %692 = vmatprep.mubr.bf16.mxu0 0
      %693 = vmatmul.mubr.bf16.gmra.mrb[0].mxu0 %v555
      %v694 = vpop.f32.mrb[0].mxu0
      %v695 = vadd.f32 0.0, %v694
      %v696 = vpop.f32.mrb[0].mxu0
      %v697 = vpop.f32.mrb[0].mxu0
      %v698 = vadd.f32 0.0, %v697
      %v699 = vpop.f32.mrb[0].mxu0
      %700 = vmatprep.mubr.bf16.mxu0 0
      %701 = vmatmul.mubr.bf16.gmra.mrb[0].mxu0 %v558
      %v702 = vpop.f32.mrb[0].mxu0
      %v703 = vadd.f32 0.0, %v702
      %v704 = vpop.f32.mrb[0].mxu0
      %v705 = vpop.f32.mrb[0].mxu0
      %v706 = vadd.f32 0.0, %v705
      %v707 = vpop.f32.mrb[0].mxu0
      %708 = vmatprep.mubr.bf16.mxu0 0
      %709 = vmatmul.mubr.bf16.gmra.mrb[0].mxu0 %v561
      %v710 = vpop.f32.mrb[0].mxu0
      %v711 = vadd.f32 0.0, %v710
      %v712 = vpop.f32.mrb[0].mxu0
      %v713 = vpop.f32.mrb[0].mxu0
      %v714 = vadd.f32 0.0, %v713
      %v715 = vpop.f32.mrb[0].mxu0
      %716 = vmatprep.mubr.bf16.mxu0 0
      %717 = vmatmul.mubr.bf16.gmra.mrb[0].mxu0 %v564
      %v718 = vpop.f32.mrb[0].mxu0
      %v719 = vadd.f32 0.0, %v718
      %v720 = vpop.f32.mrb[0].mxu0
      %v721 = vpop.f32.mrb[0].mxu0
      %v722 = vadd.f32 0.0, %v721
      %v723 = vpop.f32.mrb[0].mxu0
      %724 = vmatprep.mubr.bf16.mxu0 0
      %725 = vmatmul.mubr.bf16.gmra.mrb[0].mxu0 %v567
      %v726 = vpop.f32.mrb[0].mxu0
      %v727 = vadd.f32 0.0, %v726
      %v728 = vpop.f32.mrb[0].mxu0
      %v729 = vpop.f32.mrb[0].mxu0
      %v730 = vadd.f32 0.0, %v729
      %v731 = vpop.f32.mrb[0].mxu0
      %732 = vmatprep.mubr.bf16.mxu0 0
      %733 = vmatmul.mubr.bf16.gmra.mrb[0].mxu0 %v570
      %v734 = vpop.f32.mrb[0].mxu0
      %v735 = vadd.f32 0.0, %v734
      %v736 = vpop.f32.mrb[0].mxu0
      %v737 = vpop.f32.mrb[0].mxu0
      %v738 = vadd.f32 0.0, %v737
      %v739 = vpop.f32.mrb[0].mxu0
      %740 = vmatprep.mubr.bf16.mxu0 0
      %741 = vmatmul.mubr.bf16.gmra.mrb[0].mxu0 %v573
      %v742 = vpop.f32.mrb[0].mxu0
      %v743 = vadd.f32 0.0, %v742
      %v744 = vpop.f32.mrb[0].mxu0
      %v745 = vpop.f32.mrb[0].mxu0
      %v746 = vadd.f32 0.0, %v745
      %v747 = vpop.f32.mrb[0].mxu0
      %748 = vmatprep.mubr.bf16.mxu0 0
      %749 = vmatmul.mubr.bf16.gmra.mrb[0].mxu0 %v576
      %v750 = vpop.f32.mrb[0].mxu0
      %v751 = vadd.f32 0.0, %v750
      %v752 = vpop.f32.mrb[0].mxu0
      %v753 = vpop.f32.mrb[0].mxu0
      %v754 = vadd.f32 0.0, %v753
      %v755 = vpop.f32.mrb[0].mxu0
      %756 = vmatprep.mubr.bf16.mxu0 0
      %757 = vmatmul.mubr.bf16.gmra.mrb[0].mxu0 %v579
      %v758 = vpop.f32.mrb[0].mxu0
      %v759 = vadd.f32 0.0, %v758
      %v760 = vpop.f32.mrb[0].mxu0
      %v761 = vpop.f32.mrb[0].mxu0
      %v762 = vadd.f32 0.0, %v761
      %v763 = vpop.f32.mrb[0].mxu0
      %764 = vmatprep.mubr.bf16.mxu0 0
      %765 = vmatmul.mubr.bf16.gmra.mrb[0].mxu0 %v582
      %v766 = vpop.f32.mrb[0].mxu0
      %v767 = vadd.f32 0.0, %v766
      %v768 = vpop.f32.mrb[0].mxu0
      %v769 = vpop.f32.mrb[0].mxu0
      %v770 = vadd.f32 0.0, %v769
      %v771 = vpop.f32.mrb[0].mxu0
      %772 = vmatprep.mubr.bf16.mxu0 0
      %773 = vmatmul.mubr.bf16.gmra.mrb[0].mxu0 %v585
      %v774 = vpop.f32.mrb[0].mxu0
      %v775 = vadd.f32 0.0, %v774
      %v776 = vpop.f32.mrb[0].mxu0
      %v777 = vpop.f32.mrb[0].mxu0
      %v778 = vadd.f32 0.0, %v777
      %v779 = vpop.f32.mrb[0].mxu0
      %780 = vmatprep.mubr.bf16.mxu0 0
      %781 = vmatmul.mubr.bf16.gmra.mrb[0].mxu0 %v588
      %v782 = vpop.f32.mrb[0].mxu0
      %v783 = vadd.f32 0.0, %v782
      %v784 = vpop.f32.mrb[0].mxu0
      %v785 = vpop.f32.mrb[0].mxu0
      %v786 = vadd.f32 0.0, %v785
      %v787 = vpop.f32.mrb[0].mxu0
      %788 = vmatprep.mubr.bf16.mxu0 0
      %789 = vmatmul.mubr.bf16.gmra.mrb[0].mxu0 %v591
      %v790 = vpop.f32.mrb[0].mxu0
      %v791 = vadd.f32 0.0, %v790
      %v792 = vpop.f32.mrb[0].mxu0
      %v793 = vpop.f32.mrb[0].mxu0
      %v794 = vadd.f32 0.0, %v793
      %v795 = vpop.f32.mrb[0].mxu0
      %796 = vmatprep.mubr.bf16.mxu0 0
      %797 = vmatmul.mubr.bf16.gmra.mrb[0].mxu0 %v594
      %v798 = vpop.f32.mrb[0].mxu0
      %v799 = vadd.f32 0.0, %v798
      %v800 = vpop.f32.mrb[0].mxu0
      %v801 = vpop.f32.mrb[0].mxu0
      %v802 = vadd.f32 0.0, %v801
      %v803 = vpop.f32.mrb[0].mxu0
      %804 = vmatprep.mubr.bf16.mxu0 0
      %805 = vmatmul.mubr.bf16.gmra.mrb[0].mxu0 %v597
      %v806 = vpop.f32.mrb[0].mxu0
      %v807 = vadd.f32 0.0, %v806
      %v808 = vpop.f32.mrb[0].mxu0
      %v809 = vpop.f32.mrb[0].mxu0
      %v810 = vadd.f32 0.0, %v809
      %v811 = vpop.f32.mrb[0].mxu0
      %812 = vmatprep.mubr.bf16.mxu0 0
      %813 = vmatmul.mubr.bf16.gmra.mrb[0].mxu0 %v600
      %v814 = vpop.f32.mrb[0].mxu0
      %v815 = vadd.f32 0.0, %v814
      %v816 = vpop.f32.mrb[0].mxu0
      %v817 = vpop.f32.mrb[0].mxu0
      %v818 = vadd.f32 0.0, %v817
      %v819 = vpop.f32.mrb[0].mxu0
      %820 = vmatprep.mubr.bf16.mxu0 0
      %821 = vmatmul.mubr.bf16.gmra.mrb[0].mxu0 %v603
      %v822 = vpop.f32.mrb[0].mxu0
      %v823 = vadd.f32 0.0, %v822
      %v824 = vpop.f32.mrb[0].mxu0
      %v825 = vpop.f32.mrb[0].mxu0
      %v826 = vadd.f32 0.0, %v825
      %v827 = vpop.f32.mrb[0].mxu0
      %828 = vmatprep.mubr.bf16.mxu0 0
      %829 = vmatmul.mubr.bf16.gmra.mrb[0].mxu0 %v606
      %v830 = vpop.f32.mrb[0].mxu0
      %v831 = vadd.f32 0.0, %v830
      %v832 = vpop.f32.mrb[0].mxu0
      %v833 = vpop.f32.mrb[0].mxu0
      %v834 = vadd.f32 0.0, %v833
      %v835 = vpop.f32.mrb[0].mxu0
      %836 = vmatprep.mubr.bf16.mxu0 0
      %837 = vmatmul.mubr.bf16.gmra.mrb[0].mxu0 %v609
      %v838 = vpop.f32.mrb[0].mxu0
      %v839 = vadd.f32 0.0, %v838
      %v840 = vpop.f32.mrb[0].mxu0
      %v841 = vpop.f32.mrb[0].mxu0
      %v842 = vadd.f32 0.0, %v841
      %v843 = vpop.f32.mrb[0].mxu0
      %844 = vmatprep.mubr.bf16.mxu0 0
      %845 = vmatmul.mubr.bf16.gmra.mrb[0].mxu0 %v612
      %v846 = vpop.f32.mrb[0].mxu0
      %v847 = vadd.f32 0.0, %v846
      %v848 = vpop.f32.mrb[0].mxu0
      %v849 = vpop.f32.mrb[0].mxu0
      %v850 = vadd.f32 0.0, %v849
      %v851 = vpop.f32.mrb[0].mxu0
      %852 = vmatprep.mubr.bf16.mxu0 0
      %853 = vmatmul.mubr.bf16.gmra.mrb[0].mxu0 %v615
      %v854 = vpop.f32.mrb[0].mxu0
      %v855 = vadd.f32 0.0, %v854
      %v856 = vpop.f32.mrb[0].mxu0
      %v857 = vpop.f32.mrb[0].mxu0
      %v858 = vadd.f32 0.0, %v857
      %v859 = vpop.f32.mrb[0].mxu0
      %860 = vmatprep.mubr.bf16.mxu0 0
      %861 = vmatmul.mubr.bf16.gmra.mrb[0].mxu0 %v618
      %v862 = vpop.f32.mrb[0].mxu0
      %v863 = vadd.f32 0.0, %v862
      %v864 = vpop.f32.mrb[0].mxu0
      %v865 = vpop.f32.mrb[0].mxu0
      %v866 = vadd.f32 0.0, %v865
      %v867 = vpop.f32.mrb[0].mxu0
      %868 = vmatprep.mubr.bf16.mxu0 0
      %869 = vmatmul.mubr.bf16.gmra.mrb[0].mxu0 %v621
      %v870 = vpop.f32.mrb[0].mxu0
      %v871 = vadd.f32 0.0, %v870
      %v872 = vpop.f32.mrb[0].mxu0
      %v873 = vpop.f32.mrb[0].mxu0
      %v874 = vadd.f32 0.0, %v873
      %v875 = vpop.f32.mrb[0].mxu0
      %876 = vmatprep.mubr.bf16.mxu0 0
      %877 = vmatmul.mubr.bf16.gmra.mrb[0].mxu0 %v624
      %v878 = vpop.f32.mrb[0].mxu0
      %v879 = vadd.f32 0.0, %v878
      %v880 = vpop.f32.mrb[0].mxu0
      %v881 = vpop.f32.mrb[0].mxu0
      %v882 = vadd.f32 0.0, %v881
      %v883 = vpop.f32.mrb[0].mxu0
      %884 = vmatprep.mubr.bf16.mxu0 0
      %885 = vmatmul.mubr.bf16.gmra.mrb[0].mxu0 %v627
      %v886 = vpop.f32.mrb[0].mxu0
      %v887 = vadd.f32 0.0, %v886
      %v888 = vpop.f32.mrb[0].mxu0
      %v889 = vpop.f32.mrb[0].mxu0
      %v890 = vadd.f32 0.0, %v889
      %v891 = vpop.f32.mrb[0].mxu0
      %892 = vmatprep.mubr.bf16.mxu0 0
      %893 = vmatmul.mubr.bf16.gmra.mrb[0].mxu0 %v630
      %v894 = vpop.f32.mrb[0].mxu0
      %v895 = vadd.f32 0.0, %v894
      %v896 = vpop.f32.mrb[0].mxu0
      %v897 = vpop.f32.mrb[0].mxu0
      %v898 = vadd.f32 0.0, %v897
      %v899 = vpop.f32.mrb[0].mxu0
      %900 = vmatprep.mubr.bf16.mxu0 0
      %901 = vmatmul.mubr.bf16.gmra.mrb[0].mxu0 %v633
      %v902 = vpop.f32.mrb[0].mxu0
      %v903 = vadd.f32 0.0, %v902
      %v904 = vpop.f32.mrb[0].mxu0
      %v905 = vpop.f32.mrb[0].mxu0
      %v906 = vadd.f32 0.0, %v905
      %v907 = vpop.f32.mrb[0].mxu0
      %908 = vmatprep.mubr.bf16.mxu0 0
      %909 = vmatmul.mubr.bf16.gmra.mrb[0].mxu0 %v636
      %v910 = vpop.f32.mrb[0].mxu0
      %v911 = vadd.f32 0.0, %v910
      %v912 = vpop.f32.mrb[0].mxu0
      %v913 = vpop.f32.mrb[0].mxu0
      %v914 = vadd.f32 0.0, %v913
      %v915 = vpop.f32.mrb[0].mxu0
      %916 = vmatprep.mubr.bf16.mxu0 0
      %917 = vmatmul.mubr.bf16.gmra.mrb[0].mxu0 %v639
      %v918 = vpop.f32.mrb[0].mxu0
      %v919 = vadd.f32 0.0, %v918
      %v920 = vpop.f32.mrb[0].mxu0
      %v921 = vpop.f32.mrb[0].mxu0
      %v922 = vadd.f32 0.0, %v921
      %v923 = vpop.f32.mrb[0].mxu0
      %924 = vmatprep.mubr.bf16.mxu0 0
      %925 = vmatmul.mubr.bf16.gmra.mrb[0].mxu0 %v642
      %v926 = vpop.f32.mrb[0].mxu0
      %v927 = vadd.f32 0.0, %v926
      %v928 = vpop.f32.mrb[0].mxu0
      %v929 = vpop.f32.mrb[0].mxu0
      %v930 = vadd.f32 0.0, %v929
      %v931 = vpop.f32.mrb[0].mxu0
      %932 = vdwg.mxu0
      %933 = vst [vmem:[%s304] sm:$0xff] %v679
      %934 = vst [vmem:[%s304 + $0x8] sm:$0xff] %v682
      %935 = vst [vmem:[%s304 + $0x10] sm:$0xff] %v687
      %936 = vst [vmem:[%s304 + $0x18] sm:$0xff] %v690
      %937 = vst [vmem:[%s304 + $0x20] sm:$0xff] %v695
      %938 = vst [vmem:[%s304 + $0x28] sm:$0xff] %v698
      %939 = vst [vmem:[%s304 + $0x30] sm:$0xff] %v703
      %940 = vst [vmem:[%s304 + $0x38] sm:$0xff] %v706
      %941 = vst [vmem:[%s304 + $0x40] sm:$0xff] %v711
      %942 = vst [vmem:[%s304 + $0x48] sm:$0xff] %v714
      %943 = vst [vmem:[%s304 + $0x50] sm:$0xff] %v719
      %944 = vst [vmem:[%s304 + $0x58] sm:$0xff] %v722
      %945 = vst [vmem:[%s304 + $0x60] sm:$0xff] %v727
      %946 = vst [vmem:[%s304 + $0x68] sm:$0xff] %v730
      %947 = vst [vmem:[%s304 + $0x70] sm:$0xff] %v735
      %948 = vst [vmem:[%s304 + $0x78] sm:$0xff] %v738
      %949 = vst [vmem:[%s304 + $0x80] sm:$0xff] %v743
      %950 = vst [vmem:[%s304 + $0x88] sm:$0xff] %v746
      %951 = vst [vmem:[%s304 + $0x90] sm:$0xff] %v751
      %952 = vst [vmem:[%s304 + $0x98] sm:$0xff] %v754
      %953 = vst [vmem:[%s304 + $0xa0] sm:$0xff] %v759
      %954 = vst [vmem:[%s304 + $0xa8] sm:$0xff] %v762
      %955 = vst [vmem:[%s304 + $0xb0] sm:$0xff] %v767
      %956 = vst [vmem:[%s304 + $0xb8] sm:$0xff] %v770
      %957 = vst [vmem:[%s304 + $0xc0] sm:$0xff] %v775
      %958 = vst [vmem:[%s304 + $0xc8] sm:$0xff] %v778
      %959 = vst [vmem:[%s304 + $0xd0] sm:$0xff] %v783
      %960 = vst [vmem:[%s304 + $0xd8] sm:$0xff] %v786
      %961 = vst [vmem:[%s304 + $0xe0] sm:$0xff] %v791
      %962 = vst [vmem:[%s304 + $0xe8] sm:$0xff] %v794
      %963 = vst [vmem:[%s304 + $0xf0] sm:$0xff] %v799
      %964 = vst [vmem:[%s304 + $0xf8] sm:$0xff] %v802
      %965 = vst [vmem:[%s304 + $0x100] sm:$0xff] %v807
      %966 = vst [vmem:[%s304 + $0x108] sm:$0xff] %v810
      %967 = vst [vmem:[%s304 + $0x110] sm:$0xff] %v815
      %968 = vst [vmem:[%s304 + $0x118] sm:$0xff] %v818
      %969 = vst [vmem:[%s304 + $0x120] sm:$0xff] %v823
      %970 = vst [vmem:[%s304 + $0x128] sm:$0xff] %v826
      %971 = vst [vmem:[%s304 + $0x130] sm:$0xff] %v831
      %972 = vst [vmem:[%s304 + $0x138] sm:$0xff] %v834
      %973 = vst [vmem:[%s304 + $0x140] sm:$0xff] %v839
      %974 = vst [vmem:[%s304 + $0x148] sm:$0xff] %v842
      %975 = vst [vmem:[%s304 + $0x150] sm:$0xff] %v847
      %976 = vst [vmem:[%s304 + $0x158] sm:$0xff] %v850
      %977 = vst [vmem:[%s304 + $0x160] sm:$0xff] %v855
      %978 = vst [vmem:[%s304 + $0x168] sm:$0xff] %v858
      %979 = vst [vmem:[%s304 + $0x170] sm:$0xff] %v863
      %980 = vst [vmem:[%s304 + $0x178] sm:$0xff] %v866
      %981 = vst [vmem:[%s304 + $0x180] sm:$0xff] %v871
      %982 = vst [vmem:[%s304 + $0x188] sm:$0xff] %v874
      %983 = vst [vmem:[%s304 + $0x190] sm:$0xff] %v879
      %984 = vst [vmem:[%s304 + $0x198] sm:$0xff] %v882
      %985 = vst [vmem:[%s304 + $0x1a0] sm:$0xff] %v887
      %986 = vst [vmem:[%s304 + $0x1a8] sm:$0xff] %v890
      %987 = vst [vmem:[%s304 + $0x1b0] sm:$0xff] %v895
      %988 = vst [vmem:[%s304 + $0x1b8] sm:$0xff] %v898
      %989 = vst [vmem:[%s304 + $0x1c0] sm:$0xff] %v903
      %990 = vst [vmem:[%s304 + $0x1c8] sm:$0xff] %v906
      %991 = vst [vmem:[%s304 + $0x1d0] sm:$0xff] %v911
      %992 = vst [vmem:[%s304 + $0x1d8] sm:$0xff] %v914
      %993 = vst [vmem:[%s304 + $0x1e0] sm:$0xff] %v919
      %994 = vst [vmem:[%s304 + $0x1e8] sm:$0xff] %v922
      %995 = vst [vmem:[%s304 + $0x1f0] sm:$0xff] %v927
      %996 = vst [vmem:[%s304 + $0x1f8] sm:$0xff] %v930
      %v997 = vld [vmem:[#allocation2] sm:$0x1]
      %v998 = vadd.f32 %v679, %v682
      %v999 = vadd.f32 %v998, %v687
      %v1000 = vadd.f32 %v999, %v690
      %v1001 = vadd.f32 %v1000, %v695
      %v1002 = vadd.f32 %v1001, %v698
      %v1003 = vadd.f32 %v1002, %v703
      %v1004 = vadd.f32 %v1003, %v706
      %v1005 = vadd.f32 %v1004, %v711
      %v1006 = vadd.f32 %v1005, %v714
      %v1007 = vadd.f32 %v1006, %v719
      %v1008 = vadd.f32 %v1007, %v722
      %v1009 = vadd.f32 %v1008, %v727
      %v1010 = vadd.f32 %v1009, %v730
      %v1011 = vadd.f32 %v1010, %v735
      %v1012 = vadd.f32 %v1011, %v738
      %v1013 = vadd.f32 %v1012, %v743
      %v1014 = vadd.f32 %v1013, %v746
      %v1015 = vadd.f32 %v1014, %v751
      %v1016 = vadd.f32 %v1015, %v754
      %v1017 = vadd.f32 %v1016, %v759
      %v1018 = vadd.f32 %v1017, %v762
      %v1019 = vadd.f32 %v1018, %v767
      %v1020 = vadd.f32 %v1019, %v770
      %v1021 = vadd.f32 %v1020, %v775
      %v1022 = vadd.f32 %v1021, %v778
      %v1023 = vadd.f32 %v1022, %v783
      %v1024 = vadd.f32 %v1023, %v786
      %v1025 = vadd.f32 %v1024, %v791
      %v1026 = vadd.f32 %v1025, %v794
      %v1027 = vadd.f32 %v1026, %v799
      %v1028 = vadd.f32 %v1027, %v802
      %v1029 = vadd.f32 %v1028, %v807
      %v1030 = vadd.f32 %v1029, %v810
      %v1031 = vadd.f32 %v1030, %v815
      %v1032 = vadd.f32 %v1031, %v818
      %v1033 = vadd.f32 %v1032, %v823
      %v1034 = vadd.f32 %v1033, %v826
      %v1035 = vadd.f32 %v1034, %v831
      %v1036 = vadd.f32 %v1035, %v834
      %v1037 = vadd.f32 %v1036, %v839
      %v1038 = vadd.f32 %v1037, %v842
      %v1039 = vadd.f32 %v1038, %v847
      %v1040 = vadd.f32 %v1039, %v850
      %v1041 = vadd.f32 %v1040, %v855
      %v1042 = vadd.f32 %v1041, %v858
      %v1043 = vadd.f32 %v1042, %v863
      %v1044 = vadd.f32 %v1043, %v866
      %v1045 = vadd.f32 %v1044, %v871
      %v1046 = vadd.f32 %v1045, %v874
      %v1047 = vadd.f32 %v1046, %v879
      %v1048 = vadd.f32 %v1047, %v882
      %v1049 = vadd.f32 %v1048, %v887
      %v1050 = vadd.f32 %v1049, %v890
      %v1051 = vadd.f32 %v1050, %v895
      %v1052 = vadd.f32 %v1051, %v898
      %v1053 = vadd.f32 %v1052, %v903
      %v1054 = vadd.f32 %v1053, %v906
      %v1055 = vadd.f32 %v1054, %v911
      %v1056 = vadd.f32 %v1055, %v914
      %v1057 = vadd.f32 %v1056, %v919
      %v1058 = vadd.f32 %v1057, %v922
      %v1059 = vadd.f32 %v1058, %v927
      %v1060 = vadd.f32 %v1059, %v930
      %v1061 = vrot.slane %v1060, 4
      %v1062 = vadd.f32 %v1060, %v1061
      %v1063 = vrot.slane %v1062, 2
      %v1064 = vadd.f32 %v1062, %v1063
      %v1065 = vrot.slane %v1064, 1
      %v1066 = vadd.f32 %v1064, %v1065
      %v1067 = vadd.f32 %v997, %v1066
      %1068 = vst [vmem:[#allocation2] sm:$0x1] %v1067
      %v1069 = vld [vmem:[#allocation3] sm:$0x1]
      %v1070 = vmul.f32 %v679, %v679
      %v1071 = vmul.f32 %v682, %v682
      %v1072 = vmul.f32 %v687, %v687
      %v1073 = vmul.f32 %v690, %v690
      %v1074 = vmul.f32 %v695, %v695
      %v1075 = vmul.f32 %v698, %v698
      %v1076 = vmul.f32 %v703, %v703
      %v1077 = vmul.f32 %v706, %v706
      %v1078 = vmul.f32 %v711, %v711
      %v1079 = vmul.f32 %v714, %v714
      %v1080 = vmul.f32 %v719, %v719
      %v1081 = vmul.f32 %v722, %v722
      %v1082 = vmul.f32 %v727, %v727
      %v1083 = vmul.f32 %v730, %v730
      %v1084 = vmul.f32 %v735, %v735
      %v1085 = vmul.f32 %v738, %v738
      %v1086 = vmul.f32 %v743, %v743
      %v1087 = vmul.f32 %v746, %v746
      %v1088 = vmul.f32 %v751, %v751
      %v1089 = vmul.f32 %v754, %v754
      %v1090 = vmul.f32 %v759, %v759
      %v1091 = vmul.f32 %v762, %v762
      %v1092 = vmul.f32 %v767, %v767
      %v1093 = vmul.f32 %v770, %v770
      %v1094 = vmul.f32 %v775, %v775
      %v1095 = vmul.f32 %v778, %v778
      %v1096 = vmul.f32 %v783, %v783
      %v1097 = vmul.f32 %v786, %v786
      %v1098 = vmul.f32 %v791, %v791
      %v1099 = vmul.f32 %v794, %v794
      %v1100 = vmul.f32 %v799, %v799
      %v1101 = vmul.f32 %v802, %v802
      %v1102 = vmul.f32 %v807, %v807
      %v1103 = vmul.f32 %v810, %v810
      %v1104 = vmul.f32 %v815, %v815
      %v1105 = vmul.f32 %v818, %v818
      %v1106 = vmul.f32 %v823, %v823
      %v1107 = vmul.f32 %v826, %v826
      %v1108 = vmul.f32 %v831, %v831
      %v1109 = vmul.f32 %v834, %v834
      %v1110 = vmul.f32 %v839, %v839
      %v1111 = vmul.f32 %v842, %v842
      %v1112 = vmul.f32 %v847, %v847
      %v1113 = vmul.f32 %v850, %v850
      %v1114 = vmul.f32 %v855, %v855
      %v1115 = vmul.f32 %v858, %v858
      %v1116 = vmul.f32 %v863, %v863
      %v1117 = vmul.f32 %v866, %v866
      %v1118 = vmul.f32 %v871, %v871
      %v1119 = vmul.f32 %v874, %v874
      %v1120 = vmul.f32 %v879, %v879
      %v1121 = vmul.f32 %v882, %v882
      %v1122 = vmul.f32 %v887, %v887
      %v1123 = vmul.f32 %v890, %v890
      %v1124 = vmul.f32 %v895, %v895
      %v1125 = vmul.f32 %v898, %v898
      %v1126 = vmul.f32 %v903, %v903
      %v1127 = vmul.f32 %v906, %v906
      %v1128 = vmul.f32 %v911, %v911
      %v1129 = vmul.f32 %v914, %v914
      %v1130 = vmul.f32 %v919, %v919
      %v1131 = vmul.f32 %v922, %v922
      %v1132 = vmul.f32 %v927, %v927
      %v1133 = vmul.f32 %v930, %v930
      %v1134 = vadd.f32 %v1070, %v1071
      %v1135 = vadd.f32 %v1134, %v1072
      %v1136 = vadd.f32 %v1135, %v1073
      %v1137 = vadd.f32 %v1136, %v1074
      %v1138 = vadd.f32 %v1137, %v1075
      %v1139 = vadd.f32 %v1138, %v1076
      %v1140 = vadd.f32 %v1139, %v1077
      %v1141 = vadd.f32 %v1140, %v1078
      %v1142 = vadd.f32 %v1141, %v1079
      %v1143 = vadd.f32 %v1142, %v1080
      %v1144 = vadd.f32 %v1143, %v1081
      %v1145 = vadd.f32 %v1144, %v1082
      %v1146 = vadd.f32 %v1145, %v1083
      %v1147 = vadd.f32 %v1146, %v1084
      %v1148 = vadd.f32 %v1147, %v1085
      %v1149 = vadd.f32 %v1148, %v1086
      %v1150 = vadd.f32 %v1149, %v1087
      %v1151 = vadd.f32 %v1150, %v1088
      %v1152 = vadd.f32 %v1151, %v1089
      %v1153 = vadd.f32 %v1152, %v1090
      %v1154 = vadd.f32 %v1153, %v1091
      %v1155 = vadd.f32 %v1154, %v1092
      %v1156 = vadd.f32 %v1155, %v1093
      %v1157 = vadd.f32 %v1156, %v1094
      %v1158 = vadd.f32 %v1157, %v1095
      %v1159 = vadd.f32 %v1158, %v1096
      %v1160 = vadd.f32 %v1159, %v1097
      %v1161 = vadd.f32 %v1160, %v1098
      %v1162 = vadd.f32 %v1161, %v1099
      %v1163 = vadd.f32 %v1162, %v1100
      %v1164 = vadd.f32 %v1163, %v1101
      %v1165 = vadd.f32 %v1164, %v1102
      %v1166 = vadd.f32 %v1165, %v1103
      %v1167 = vadd.f32 %v1166, %v1104
      %v1168 = vadd.f32 %v1167, %v1105
      %v1169 = vadd.f32 %v1168, %v1106
      %v1170 = vadd.f32 %v1169, %v1107
      %v1171 = vadd.f32 %v1170, %v1108
      %v1172 = vadd.f32 %v1171, %v1109
      %v1173 = vadd.f32 %v1172, %v1110
      %v1174 = vadd.f32 %v1173, %v1111
      %v1175 = vadd.f32 %v1174, %v1112
      %v1176 = vadd.f32 %v1175, %v1113
      %v1177 = vadd.f32 %v1176, %v1114
      %v1178 = vadd.f32 %v1177, %v1115
      %v1179 = vadd.f32 %v1178, %v1116
      %v1180 = vadd.f32 %v1179, %v1117
      %v1181 = vadd.f32 %v1180, %v1118
      %v1182 = vadd.f32 %v1181, %v1119
      %v1183 = vadd.f32 %v1182, %v1120
      %v1184 = vadd.f32 %v1183, %v1121
      %v1185 = vadd.f32 %v1184, %v1122
      %v1186 = vadd.f32 %v1185, %v1123
      %v1187 = vadd.f32 %v1186, %v1124
      %v1188 = vadd.f32 %v1187, %v1125
      %v1189 = vadd.f32 %v1188, %v1126
      %v1190 = vadd.f32 %v1189, %v1127
      %v1191 = vadd.f32 %v1190, %v1128
      %v1192 = vadd.f32 %v1191, %v1129
      %v1193 = vadd.f32 %v1192, %v1130
      %v1194 = vadd.f32 %v1193, %v1131
      %v1195 = vadd.f32 %v1194, %v1132
      %v1196 = vadd.f32 %v1195, %v1133
      %v1197 = vrot.slane %v1196, 4
      %v1198 = vadd.f32 %v1196, %v1197
      %v1199 = vrot.slane %v1198, 2
      %v1200 = vadd.f32 %v1198, %v1199
      %v1201 = vrot.slane %v1200, 1
      %v1202 = vadd.f32 %v1200, %v1201
      %v1203 = vadd.f32 %v1069, %v1202
      %1204 = vst [vmem:[#allocation3] sm:$0x1] %v1203
      %p1205 = scmp.eq.s32.totalorder %s22, 3
      %p1206 = pnand %p1205, %p308
      %p1207 = pneg %p1206
      // Predicated region
      $region41: #{generator_block.2} parent=35 // pred_check
        _
      $region42: #{generator_block.2} parent=35 // pred_check_branch
        %1209 = sbr.rel (%p1206) target = $region44
      $region43: #{generator_block.2} parent=35 // pred_region
        %v1210 = vld [vmem:[#allocation2] sm:$0x1]
        %v1211 = vmul.f32 %v1210, 0.00048828125
        %v1212 = vld [vmem:[#allocation3] sm:$0x1]
        %v1213 = vmul.f32 %v1212, 0.00048828125
        %v1214 = vmul.f32 %v1211, %v1211
        %v1215 = vsub.f32 %v1213, %v1214
        %v1216 = vmax.f32 %v1215, 0.0
        %v1217 = vadd.f32 %v1216, 1e-05
        %v1218 = vrsqrt.pop %v1217
        %v1219 = vld [vmem:[%s2] sm:$0x1]
        %v1220 = vmul.f32 %v1219, %v1218
        %1221 = vst [vmem:[%s5] sm:$0x1] %v1220
        %v1222 = vld [vmem:[%s3] sm:$0x1]
        %v1223 = vmul.f32 %v1211, %v1220
        %v1224 = vsub.f32 %v1222, %v1223
        %1225 = vst [vmem:[%s6] sm:$0x1] %v1224
      $region44: #{generator_block.2} parent=35 // pred_fallthru
        _
      %s1226 = smul.u32 64, %s23
      %p1227 = scmp.lt.s32.totalorder %s22, 3
      %s1228 = scalar_select %p1227, %s22, 3
      %p1229 = scmp.lt.s32.totalorder %s1226, 63
      %s1230 = scalar_select %p1229, %s1226, 63
      %s1231 = smul.addr %s1228, 64
      %s1232 = sadd.s32 %s1230, %s1231
      %s1233 = smul.addr %s1232, 8
      %s1234 = scalar_lea.vmem %s4, %s1233
      // Predicated region
      $region45: #{generator_block.2} parent=35 // pred_check
        %p1235 = pneg %p146
      $region46: #{generator_block.2} parent=35 // pred_check_branch
        %1237 = sbr.rel (%p1235) target = $region48
      $region47: #{generator_block.2} parent=35 // pred_region
        %s1238 = smul.u32 64, %s23
      $region48: #{generator_block.2} parent=35 // pred_fallthru
        _
      // Predicated region
      $region49: #{generator_block.2} parent=35 // pred_check
        %p1239 = pneg %p167
      $region50: #{generator_block.2} parent=35 // pred_check_branch
        %1241 = sbr.rel (%p1239) target = $region52
      $region51: #{generator_block.2} parent=35 // pred_region
        _
      $region52: #{generator_block.2} parent=35 // pred_fallthru
        _
      // Predicated region
      $region53: #{generator_block.2} parent=35 // pred_check
        %p1242 = pneg %p188
      $region54: #{generator_block.2} parent=35 // pred_check_branch
        %1244 = sbr.rel (%p1242) target = $region56
      $region55: #{generator_block.2} parent=35 // pred_region
        _
      $region56: #{generator_block.2} parent=35 // pred_fallthru
        _
      // Predicated region
      $region57: #{generator_block.2} parent=35 // pred_check
        %p1245 = pneg %p167
      $region58: #{generator_block.2} parent=35 // pred_check_branch
        %1247 = sbr.rel (%p1245) target = $region60
      $region59: #{generator_block.2} parent=35 // pred_region
        _
      $region60: #{generator_block.2} parent=35 // pred_fallthru
        _
      // Predicated region
      $region61: #{generator_block.2} parent=35 // pred_check
        %p1248 = pneg %p188
      $region62: #{generator_block.2} parent=35 // pred_check_branch
        %1250 = sbr.rel (%p1248) target = $region64
      $region63: #{generator_block.2} parent=35 // pred_region
        _
      $region64: #{generator_block.2} parent=35 // pred_fallthru
        _
    $region36: #{generator_block.2} parent=5 // pred_fallthru
      _
    %p1251 = scmp.le.s32.totalorder 2, %s13
    // Predicated region
    $region65: #{generator_block.2} parent=5 // pred_check
      %p1252 = pneg %p1251
    $region66: #{generator_block.2} parent=5 // pred_check_branch
      %1254 = sbr.rel (%p1252) target = $region68
    $region67: #{generator_block.2} parent=5 // pred_region
      %s1255 = ssub.s32 %s13, 2
      // Predicated region
      $region69: #{generator_block.2} parent=67 // pred_check
        %p1256 = pneg %p152
      $region70: #{generator_block.2} parent=67 // pred_check_branch
        %1258 = sbr.rel (%p1256) target = $region72
      $region71: #{generator_block.2} parent=67 // pred_region
        %s1259 = smul.u32 64, %s25
        %p1260 = scmp.lt.s32.totalorder %s24, 3
        %s1261 = scalar_select %p1260, %s24, 3
        %p1262 = scmp.lt.s32.totalorder %s1259, 63
        %s1263 = scalar_select %p1262, %s1259, 63
        %s1264 = smul.addr %s1261, 64
        %s1265 = sadd.s32 %s1263, %s1264
        %s1266 = smul.addr %s1265, 8
        %s1267 = scalar_lea.vmem %s4, %s1266
      $region72: #{generator_block.2} parent=67 // pred_fallthru
        _
    $region68: #{generator_block.2} parent=5 // pred_fallthru
      _
  $region6: #{generator_block.2} parent=0 // loop_footer
    %s17 = sadd.s32 1, %s13
  $region7: #{generator_block.2} parent=0 // loop_footer_branch
    %12 = sbr.rel target = $region3
  $region8: #{generator_block.2} parent=0 // loop_exit
    _

</llo_original>
